<compile_context>
chip_gen: v7x
topology: tpu7x:2x2x1
jax: 0.10.0
libtpu: 0.0.40
codegen_flags: <defaults>
</compile_context>

<pallas_src>
import functools
import math

import jax
import jax.numpy as jnp
from jax.experimental import pallas as pl
from jax.experimental.pallas import tpu as pltpu


def _round_up(x: int, m: int) -> int:
    return ((x + m - 1) // m) * m


def _vmem_limit_bytes() -> int:
    """Generation-dependent scoped-VMEM limit (headroom below physical)."""
    try:
        cap = int(pltpu.get_tpu_info().vmem_capacity_bytes)
    except Exception:
        cap = 64 * 1024 * 1024          # conservative (v7x-sized) fallback
    # v7x (64 MiB phys) -> 48 MiB; v5e/v6e (128 MiB phys) -> 100 MiB.
    return max(32 * 1024 * 1024, min(cap - 16 * 1024 * 1024, 100 * 1024 * 1024))


# ------------------------------ Pallas kernel --------------------------------
def gcn_fused_kernel(a_ref, emb_in_hbm, w_ref, p_ref,
                     out_hbm, emb_sc, out_stage, copy_sem,
                     *, num_layer: int, dim: int, tm: int,
                     a_resident: bool, eps: float = 1e-5):
    """One grid step = one (layer, row-tile).

    a_ref      : int8 adjacency; (N_pad, N_pad) resident or (tm, N_pad) slab
    emb_in_hbm : (N_pad, D) bf16 in HBM (pl.ANY)  -- DMA'd into scratch once
    w_ref      : (2D, D)  bf16   this layer's [W_emb ; W_agg]^T
    p_ref      : (3, D)   f32    rows = bias / LayerNorm gamma / LayerNorm beta
    out_hbm    : (nt, tm, D) f32 in HBM (pl.ANY)  -- written via manual DMA
    emb_sc     : (2, N_pad, D) bf16  double-buffered resident activations
    out_stage  : (tm, D) f32  staging buffer for the final-layer writeback
    """
    l = pl.program_id(0)                       # layer index (outer, sequential)
    t = pl.program_id(1)                       # row-tile index (inner)

    cur = jax.lax.rem(l, 2)                    # slot holding layer-l input
    nxt = 1 - cur                              # slot receiving layer-l output

    # Stage the (padded, bf16) input embeddings into slot 0 exactly once.
    @pl.when(jnp.logical_and(l == 0, t == 0))
    def _():
        cp = pltpu.make_async_copy(emb_in_hbm, emb_sc.at[0], copy_sem)
        cp.start()
        cp.wait()

    row0 = pl.multiple_of(t * tm, tm)
    src = emb_sc.at[cur]                       # previous-layer activations
    dst = emb_sc.at[nxt]                       # this layer's output buffer

    # ---- 'sum' aggregation: int8 A widened to bf16, f32 MXU accumulation ----
    if a_resident:
        a_rows = a_ref[pl.ds(row0, tm), :]     # (tm, N_pad) int8
    else:
        a_rows = a_ref[...]                    # streamed slab (re-read / layer)
    agg = jnp.dot(a_rows.astype(jnp.bfloat16), src[...],
                  preferred_element_type=jnp.float32)          # (tm, D) f32

    # ---- projection: split bf16 dots (no (tm, 2D) concat materialization) ---
    emb_rows = src[pl.ds(row0, tm), :]                         # (tm, D) bf16
    w_emb = w_ref[:dim, :]                                     # (D, D) bf16
    w_agg = w_ref[dim:, :]                                     # (D, D) bf16
    x = jnp.dot(emb_rows, w_emb, preferred_element_type=jnp.float32)
    x = x + jnp.dot(agg.astype(jnp.bfloat16), w_agg,
                    preferred_element_type=jnp.float32)
    x = x + p_ref[0:1, :]                                      # bias (f32)

    # ---- LayerNorm (PyTorch semantics, eps = 1e-5), all in f32 on the VPU ---
    mean = jnp.mean(x, axis=-1, keepdims=True)
    xc = x - mean
    var = jnp.mean(xc * xc, axis=-1, keepdims=True)
    y = xc * jax.lax.rsqrt(var + eps) * p_ref[1:2, :] + p_ref[2:3, :]

    # ReLU on all but the last layer: one vselect instead of a mul/add blend.
    y = jnp.where(l < num_layer - 1, jnp.maximum(y, 0.0), y)

    # Keep the activation resident (bf16) in VMEM for the next layer.
    dst[pl.ds(row0, tm), :] = y.astype(jnp.bfloat16)

    # Only the final layer's activations ever leave the chip (f32, manual DMA).
    @pl.when(l == num_layer - 1)
    def _():
        out_stage[...] = y
        cp = pltpu.make_async_copy(out_stage, out_hbm.at[t], copy_sem)
        cp.start()
        cp.wait()


def gcn_fused_pallas(a_i8, emb_bf16, w_cat, ln_p,
                     *, num_layer, n_pad, dim, tm, a_resident):
    nt = n_pad // tm
    kernel = functools.partial(gcn_fused_kernel, num_layer=num_layer, dim=dim,
                               tm=tm, a_resident=a_resident)

    if a_resident:
        # A DMA'd to VMEM once (constant block index) and reused every layer.
        a_spec = pl.BlockSpec((n_pad, n_pad), lambda l, t: (0, 0))
        a_reads = 1
    else:
        # A streamed in (tm, N_pad) row slabs; re-read once per layer.
        a_spec = pl.BlockSpec((tm, n_pad), lambda l, t: (t, 0))
        a_reads = num_layer

    flops = num_layer * (2 * n_pad * n_pad * dim + 2 * n_pad * (2 * dim) * dim)
    bytes_accessed = (a_reads * n_pad * n_pad                  # int8 A
                      + n_pad * dim * 2                        # emb in (bf16)
                      + n_pad * dim * 4                        # out (f32)
                      + num_layer * (2 * dim * dim * 2 + 3 * dim * 4))

    out = pl.pallas_call(
        kernel,
        out_shape=jax.ShapeDtypeStruct((nt, tm, dim), jnp.float32),
        grid_spec=pltpu.PrefetchScalarGridSpec(
            num_scalar_prefetch=0,
            grid=(num_layer, nt),
            in_specs=[
                a_spec,
                # Input embeddings stay in HBM; one manual DMA into scratch.
                pl.BlockSpec(memory_space=pl.ANY),
                # Per-layer stacked weights / packed LN params, chosen by l.
                pl.BlockSpec((None, 2 * dim, dim), lambda l, t: (l, 0, 0)),
                pl.BlockSpec((None, 3, dim), lambda l, t: (l, 0, 0)),
            ],
            # Output stays in HBM; written by manual DMA at the last layer.
            out_specs=pl.BlockSpec(memory_space=pl.ANY),
            scratch_shapes=[
                pltpu.VMEM((2, n_pad, dim), jnp.bfloat16),   # resident acts
                pltpu.VMEM((tm, dim), jnp.float32),          # f32 out staging
                pltpu.SemaphoreType.DMA,                     # manual-copy sem
            ],
        ),
        compiler_params=pltpu.CompilerParams(
            # Layer axis is a true sequential dependency; the row-tile axis
            # must also stay "arbitrary" because the next layer's aggregation
            # needs *all* row tiles held in this core's VMEM scratch.
            dimension_semantics=("arbitrary", "arbitrary"),
            vmem_limit_bytes=_vmem_limit_bytes(),
        ),
        cost_estimate=pl.CostEstimate(
            flops=flops,
            transcendentals=num_layer * n_pad,   # rsqrt per row per layer
            bytes_accessed=bytes_accessed),
    )(a_i8, emb_bf16, w_cat, ln_p)
    return out.reshape(n_pad, dim)


# -------------------------------- GCN wrapper ---------------------------------
def init_gcn_params(key, ent_num, dim, num_layer):
    """Deterministic parameter init matching the PyTorch module's __init__."""
    params = {}
    k_emb, key = jax.random.split(key)
    # nn.Embedding(ent_num + 1, dim, padding_idx=ent_num); rows 0..ent_num-1
    # are N(0, 1/sqrt(ent_num)); the padding row is never read in forward.
    emb_w = jax.random.normal(k_emb, (ent_num, dim), jnp.float32) / math.sqrt(ent_num)
    params["ent_emb"] = emb_w

    std = 1.0 / math.sqrt(dim)
    layers = []
    for _ in range(num_layer):
        k_w, key = jax.random.split(key)
        # nn.Linear(2*dim, dim): weight (dim, 2*dim) ~ U(-std, std), bias 0.
        W = jax.random.uniform(k_w, (dim, 2 * dim), jnp.float32, -std, std)
        layers.append({
            "W": W,
            "b": jnp.zeros((dim,), jnp.float32),
            "gamma": jnp.ones((dim,), jnp.float32),
            "beta": jnp.zeros((dim,), jnp.float32),
        })
    params["layers"] = layers
    return params


def gcn_forward(params, edges, ent_num, dim, num_layer, *, tm=256):
    """Forward pass of GCN(aggregate_way='sum').  Returns (ent_num, dim)."""
    n_pad = _round_up(max(ent_num, tm), 256)   # MXU-friendly padding (also %tm)

    # Glue: densify the COO adjacency (duplicate edges sum, exactly like
    # torch's sparse-COO matmul).  Padded rows/cols stay zero, so padding
    # never leaks into real rows.  int8 is exact for multiplicities <= 127.
    row, col = edges[0], edges[1]
    a = jnp.zeros((n_pad, n_pad), jnp.float32).at[row, col].add(1.0)
    a = a.astype(jnp.int8)

    emb = jnp.zeros((n_pad, dim), jnp.float32).at[:ent_num].set(params["ent_emb"])
    emb = emb.astype(jnp.bfloat16)

    # Stack per-layer parameters so one fused kernel handles every layer.
    # torch Linear weight is (D, 2D); transpose so the kernel does x @ W^T.
    w_cat = jnp.stack([lp["W"].T for lp in params["layers"]]).astype(jnp.bfloat16)
    ln_p = jnp.stack([jnp.stack([lp["b"], lp["gamma"], lp["beta"]])
                      for lp in params["layers"]])              # (L, 3, D) f32

    # Keep the whole int8 adjacency resident in VMEM across layers when it
    # comfortably fits alongside the bf16 activation scratch; otherwise stream
    # row slabs (A then gets re-read once per layer).
    a_resident = (2 * n_pad * n_pad + 4 * n_pad * dim) < 24 * 1024 * 1024

    out = gcn_fused_pallas(a, emb, w_cat, ln_p, num_layer=num_layer,
                           n_pad=n_pad, dim=dim, tm=tm, a_resident=a_resident)
    return out[:ent_num]


# ------------------------------ pure-JAX reference ----------------------------
def gcn_reference(params, edges, ent_num, dim, num_layer, eps=1e-5):
    hi = jax.lax.Precision.HIGHEST
    row, col = edges[0], edges[1]
    A = jnp.zeros((ent_num, ent_num), jnp.float32).at[row, col].add(1.0)
    emb = params["ent_emb"]
    for idx in range(num_layer):
        lp = params["layers"][idx]
        agg = jnp.matmul(A, emb, precision=hi)
        x = jnp.matmul(jnp.concatenate([emb, agg], -1), lp["W"].T,
                       precision=hi) + lp["b"]
        mu = x.mean(-1, keepdims=True)
        var = ((x - mu) ** 2).mean(-1, keepdims=True)
        x = (x - mu) * jax.lax.rsqrt(var + eps) * lp["gamma"] + lp["beta"]
        if idx != num_layer - 1:
            x = jnp.maximum(x, 0.0)
        emb = x
    return emb


# ------------------------------------ main -------------------------------------
if __name__ == "__main__":
    ENT_NUM = 200     # number of graph entities (padded to 256 inside)
    DIM = 128         # embedding dim
    NUM_LAYER = 2
    NUM_EDGES = 512

    key = jax.random.PRNGKey(0)
    k_params, k_edges = jax.random.split(key)

    params = init_gcn_params(k_params, ENT_NUM, DIM, NUM_LAYER)
    edges = jax.random.randint(k_edges, (2, NUM_EDGES), 0, ENT_NUM, jnp.int32)

    out = gcn_forward(params, edges, ENT_NUM, DIM, NUM_LAYER)
    out = jax.block_until_ready(out)

    ref = gcn_reference(params, edges, ENT_NUM, DIM, NUM_LAYER)
    assert out.shape == (ENT_NUM, DIM)
    # bf16 MXU inputs (adjacency widen, activations, weights) with f32
    # accumulation vs. a pure-f32 HIGHEST-precision reference -> loosened
    # tolerance, as sanctioned by the perf review.
    assert jnp.allclose(out, ref, atol=5e-2, rtol=5e-2), "mismatch vs reference"

    print("KERNEL_OK")
</pallas_src>

<mosaic_0001>
module attributes {stable_mosaic.version = 11 : i64} {
  func.func @gcn_fused_kernel(%arg0: i32, %arg1: i32, %arg2: memref<256x256xi8, #tpu.memory_space<vmem>>, %arg3: memref<256x128xbf16, #tpu.memory_space<any>>, %arg4: memref<1x256x128xbf16, #tpu.memory_space<vmem>>, %arg5: memref<1x3x128xf32, #tpu.memory_space<vmem>>, %arg6: memref<1x256x128xf32, #tpu.memory_space<any>>, %arg7: memref<2x256x128xbf16, #tpu.memory_space<vmem>>, %arg8: memref<256x128xf32, #tpu.memory_space<vmem>>, %arg9: memref<!tpu.dma_semaphore, #tpu.memory_space<semaphore_mem>>) attributes {dimension_semantics = [#tpu.dimension_semantics<arbitrary>, #tpu.dimension_semantics<arbitrary>], iteration_bounds = array<i64: 2, 1>, scalar_prefetch = 0 : i64, scratch_operands = 3 : i64, tpu.core_type = #tpu.core_type<tc>, window_params = [{pipeline_mode = #tpu.pipeline_mode<synchronous>, transform_indices = @transform_0, window_bounds = array<i64: 256, 256>}, {}, {transform_indices = @transform_2, window_bounds = array<i64: 1, 256, 128>}, {transform_indices = @transform_3, window_bounds = array<i64: 1, 3, 128>}, {}]} {
    %c2_i32 = arith.constant 2 : i32
    %0 = arith.remsi %arg0, %c2_i32 : i32
    %c1_i32 = arith.constant 1 : i32
    %1 = arith.subi %c1_i32, %0 : i32
    %c0_i32 = arith.constant 0 : i32
    %2 = arith.cmpi eq, %arg0, %c0_i32 : i32
    %c0_i32_0 = arith.constant 0 : i32
    %3 = arith.cmpi eq, %arg1, %c0_i32_0 : i32
    %4 = arith.andi %2, %3 : i1
    %5 = arith.extui %4 : i1 to i32
    %c0_i32_1 = arith.constant 0 : i32
    %6 = arith.cmpi ne, %5, %c0_i32_1 : i32
    scf.if %6 {
      %c0_i32_33 = arith.constant 0 : i32
      %c0_i32_34 = arith.constant 0 : i32
      %c0_i32_35 = arith.constant 0 : i32
      %68 = tpu.memref_slice %arg7[%c0_i32_33, %c0_i32_34, %c0_i32_35] : memref<2x256x128xbf16, #tpu.memory_space<vmem>> -> memref<1x256x128xbf16, #tpu.memory_space<vmem>>
      %69 = tpu.memref_squeeze %68 : memref<1x256x128xbf16, #tpu.memory_space<vmem>> -> memref<256x128xbf16, #tpu.memory_space<vmem>>
      tpu.enqueue_dma source(%arg3 : memref<256x128xbf16, #tpu.memory_space<any>>) target(%69 : memref<256x128xbf16, #tpu.memory_space<vmem>>) target_semaphore(%arg9 : memref<!tpu.dma_semaphore, #tpu.memory_space<semaphore_mem>>)
      %c0_i32_36 = arith.constant 0 : i32
      %c0_i32_37 = arith.constant 0 : i32
      %c0_i32_38 = arith.constant 0 : i32
      %70 = tpu.memref_slice %arg7[%c0_i32_36, %c0_i32_37, %c0_i32_38] : memref<2x256x128xbf16, #tpu.memory_space<vmem>> -> memref<1x256x128xbf16, #tpu.memory_space<vmem>>
      %71 = tpu.memref_squeeze %70 : memref<1x256x128xbf16, #tpu.memory_space<vmem>> -> memref<256x128xbf16, #tpu.memory_space<vmem>>
      tpu.wait_dma2 semaphore(%arg9 : memref<!tpu.dma_semaphore, #tpu.memory_space<semaphore_mem>>) src(%arg3 : memref<256x128xbf16, #tpu.memory_space<any>>) dst(%71 : memref<256x128xbf16, #tpu.memory_space<vmem>>)
    } else {
    }
    %c256_i32 = arith.constant 256 : i32
    %7 = arith.muli %arg1, %c256_i32 : i32
    %8 = tpu.assume_multiple %7, 256 : i32
    %9 = arith.index_cast %8 : i32 to index
    %c0 = arith.constant 0 : index
    %10 = vector.load %arg2[%9, %c0] : memref<256x256xi8, #tpu.memory_space<vmem>>, vector<256x256xi8>
    %11 = arith.sitofp %10 : vector<256x256xi8> to vector<256x256xbf16>
    %12 = arith.index_cast %0 : i32 to index
    %c0_2 = arith.constant 0 : index
    %c0_3 = arith.constant 0 : index
    %13 = vector.load %arg7[%12, %c0_2, %c0_3] : memref<2x256x128xbf16, #tpu.memory_space<vmem>>, vector<1x256x128xbf16>
    %14 = vector.shape_cast %13 : vector<1x256x128xbf16> to vector<256x128xbf16>
    %cst = arith.constant dense<0.000000e+00> : vector<256x128xf32>
    %15 = tpu.matmul %11, %14, %cst {dimension_numbers = #tpu.dot_dimension_numbers<[1], [0], [0], [1], [0, 0, 1, 1], [], []>} : vector<256x256xbf16>, vector<256x128xbf16>, vector<256x128xf32> -> vector<256x128xf32>
    %c0_i32_4 = arith.constant 0 : i32
    %c0_i32_5 = arith.constant 0 : i32
    %16 = tpu.memref_slice %arg7[%0, %c0_i32_4, %c0_i32_5] : memref<2x256x128xbf16, #tpu.memory_space<vmem>> -> memref<1x256x128xbf16, #tpu.memory_space<vmem>>
    %17 = tpu.memref_squeeze %16 : memref<1x256x128xbf16, #tpu.memory_space<vmem>> -> memref<256x128xbf16, #tpu.memory_space<vmem>>
    %18 = arith.index_cast %8 : i32 to index
    %c0_6 = arith.constant 0 : index
    %19 = vector.load %17[%18, %c0_6] : memref<256x128xbf16, #tpu.memory_space<vmem>>, vector<256x128xbf16>
    %c0_7 = arith.constant 0 : index
    %c0_8 = arith.constant 0 : index
    %c0_9 = arith.constant 0 : index
    %20 = vector.load %arg4[%c0_7, %c0_8, %c0_9] : memref<1x256x128xbf16, #tpu.memory_space<vmem>>, vector<1x128x128xbf16>
    %21 = vector.shape_cast %20 : vector<1x128x128xbf16> to vector<128x128xbf16>
    %c0_10 = arith.constant 0 : index
    %c128 = arith.constant 128 : index
    %c0_11 = arith.constant 0 : index
    %22 = vector.load %arg4[%c0_10, %c128, %c0_11] : memref<1x256x128xbf16, #tpu.memory_space<vmem>>, vector<1x128x128xbf16>
    %23 = vector.shape_cast %22 : vector<1x128x128xbf16> to vector<128x128xbf16>
    %cst_12 = arith.constant dense<0.000000e+00> : vector<256x128xf32>
    %24 = tpu.matmul %19, %21, %cst_12 {dimension_numbers = #tpu.dot_dimension_numbers<[1], [0], [0], [1], [0, 0, 1, 1], [], []>} : vector<256x128xbf16>, vector<128x128xbf16>, vector<256x128xf32> -> vector<256x128xf32>
    %25 = arith.truncf %15 : vector<256x128xf32> to vector<256x128xbf16>
    %cst_13 = arith.constant dense<0.000000e+00> : vector<256x128xf32>
    %26 = tpu.matmul %25, %23, %cst_13 {dimension_numbers = #tpu.dot_dimension_numbers<[1], [0], [0], [1], [0, 0, 1, 1], [], []>} : vector<256x128xbf16>, vector<128x128xbf16>, vector<256x128xf32> -> vector<256x128xf32>
    %27 = arith.addf %24, %26 : vector<256x128xf32>
    %c0_14 = arith.constant 0 : index
    %c0_15 = arith.constant 0 : index
    %c0_16 = arith.constant 0 : index
    %28 = vector.load %arg5[%c0_14, %c0_15, %c0_16] : memref<1x3x128xf32, #tpu.memory_space<vmem>>, vector<1x1x128xf32>
    %29 = vector.shape_cast %28 : vector<1x1x128xf32> to vector<1x128xf32>
    %30 = vector.broadcast %29 : vector<1x128xf32> to vector<256x128xf32>
    %31 = arith.addf %27, %30 : vector<256x128xf32>
    %cst_17 = arith.constant dense<0.000000e+00> : vector<256xf32>
    %32 = vector.multi_reduction <add>, %31, %cst_17 [1] : vector<256x128xf32> to vector<256xf32>
    %33 = vector.shape_cast %32 : vector<256xf32> to vector<256x1xf32>
    %cst_18 = arith.constant 1.280000e+02 : f32
    %34 = vector.broadcast %cst_18 : f32 to vector<256x1xf32>
    %35 = arith.divf %33, %34 : vector<256x1xf32>
    %36 = vector.broadcast %35 : vector<256x1xf32> to vector<256x128xf32>
    %37 = arith.subf %31, %36 : vector<256x128xf32>
    %38 = arith.mulf %37, %37 : vector<256x128xf32>
    %cst_19 = arith.constant dense<0.000000e+00> : vector<256xf32>
    %39 = vector.multi_reduction <add>, %38, %cst_19 [1] : vector<256x128xf32> to vector<256xf32>
    %40 = vector.shape_cast %39 : vector<256xf32> to vector<256x1xf32>
    %cst_20 = arith.constant 1.280000e+02 : f32
    %41 = vector.broadcast %cst_20 : f32 to vector<256x1xf32>
    %42 = arith.divf %40, %41 : vector<256x1xf32>
    %cst_21 = arith.constant 9.99999974E-6 : f32
    %43 = vector.broadcast %cst_21 : f32 to vector<256x1xf32>
    %44 = arith.addf %42, %43 : vector<256x1xf32>
    %45 = math.rsqrt %44 : vector<256x1xf32>
    %46 = vector.broadcast %45 : vector<256x1xf32> to vector<256x128xf32>
    %47 = arith.mulf %37, %46 : vector<256x128xf32>
    %c0_22 = arith.constant 0 : index
    %c1 = arith.constant 1 : index
    %c0_23 = arith.constant 0 : index
    %48 = vector.load %arg5[%c0_22, %c1, %c0_23] : memref<1x3x128xf32, #tpu.memory_space<vmem>>, vector<1x1x128xf32>
    %49 = vector.shape_cast %48 : vector<1x1x128xf32> to vector<1x128xf32>
    %50 = vector.broadcast %49 : vector<1x128xf32> to vector<256x128xf32>
    %51 = arith.mulf %47, %50 : vector<256x128xf32>
    %c0_24 = arith.constant 0 : index
    %c2 = arith.constant 2 : index
    %c0_25 = arith.constant 0 : index
    %52 = vector.load %arg5[%c0_24, %c2, %c0_25] : memref<1x3x128xf32, #tpu.memory_space<vmem>>, vector<1x1x128xf32>
    %53 = vector.shape_cast %52 : vector<1x1x128xf32> to vector<1x128xf32>
    %54 = vector.broadcast %53 : vector<1x128xf32> to vector<256x128xf32>
    %55 = arith.addf %51, %54 : vector<256x128xf32>
    %c1_i32_26 = arith.constant 1 : i32
    %56 = arith.cmpi slt, %arg0, %c1_i32_26 : i32
    %cst_27 = arith.constant 0.000000e+00 : f32
    %57 = vector.broadcast %cst_27 : f32 to vector<256x128xf32>
    %58 = arith.maximumf %55, %57 : vector<256x128xf32>
    %59 = arith.select %56, %58, %55 : vector<256x128xf32>
    %60 = arith.truncf %59 : vector<256x128xf32> to vector<256x128xbf16>
    %c0_i32_28 = arith.constant 0 : i32
    %c0_i32_29 = arith.constant 0 : i32
    %61 = tpu.memref_slice %arg7[%1, %c0_i32_28, %c0_i32_29] : memref<2x256x128xbf16, #tpu.memory_space<vmem>> -> memref<1x256x128xbf16, #tpu.memory_space<vmem>>
    %62 = tpu.memref_squeeze %61 : memref<1x256x128xbf16, #tpu.memory_space<vmem>> -> memref<256x128xbf16, #tpu.memory_space<vmem>>
    %63 = arith.index_cast %8 : i32 to index
    %c0_30 = arith.constant 0 : index
    %64 = vector.load %62[%63, %c0_30] : memref<256x128xbf16, #tpu.memory_space<vmem>>, vector<256x128xbf16>
    tpu.vector_store %62[%63, %c0_30], %60 {strides = array<i32>} : memref<256x128xbf16, #tpu.memory_space<vmem>>, vector<256x128xbf16>,
    %c1_i32_31 = arith.constant 1 : i32
    %65 = arith.cmpi eq, %arg0, %c1_i32_31 : i32
    %66 = arith.extui %65 : i1 to i32
    %c0_i32_32 = arith.constant 0 : i32
    %67 = arith.cmpi ne, %66, %c0_i32_32 : i32
    scf.if %67 {
      %c0_33 = arith.constant 0 : index
      %c0_34 = arith.constant 0 : index
      %68 = vector.load %arg8[%c0_33, %c0_34] : memref<256x128xf32, #tpu.memory_space<vmem>>, vector<256x128xf32>
      tpu.vector_store %arg8[%c0_33, %c0_34], %59 {strides = array<i32>} : memref<256x128xf32, #tpu.memory_space<vmem>>, vector<256x128xf32>,
      %c0_i32_35 = arith.constant 0 : i32
      %c0_i32_36 = arith.constant 0 : i32
      %69 = tpu.memref_slice %arg6[%arg1, %c0_i32_35, %c0_i32_36] : memref<1x256x128xf32, #tpu.memory_space<any>> -> memref<1x256x128xf32, #tpu.memory_space<any>>
      %70 = tpu.memref_squeeze %69 : memref<1x256x128xf32, #tpu.memory_space<any>> -> memref<256x128xf32, #tpu.memory_space<any>>
      tpu.enqueue_dma source(%arg8 : memref<256x128xf32, #tpu.memory_space<vmem>>) target(%70 : memref<256x128xf32, #tpu.memory_space<any>>) target_semaphore(%arg9 : memref<!tpu.dma_semaphore, #tpu.memory_space<semaphore_mem>>)
      %c0_i32_37 = arith.constant 0 : i32
      %c0_i32_38 = arith.constant 0 : i32
      %71 = tpu.memref_slice %arg6[%arg1, %c0_i32_37, %c0_i32_38] : memref<1x256x128xf32, #tpu.memory_space<any>> -> memref<1x256x128xf32, #tpu.memory_space<any>>
      %72 = tpu.memref_squeeze %71 : memref<1x256x128xf32, #tpu.memory_space<any>> -> memref<256x128xf32, #tpu.memory_space<any>>
      tpu.wait_dma2 semaphore(%arg9 : memref<!tpu.dma_semaphore, #tpu.memory_space<semaphore_mem>>) src(%arg8 : memref<256x128xf32, #tpu.memory_space<vmem>>) dst(%72 : memref<256x128xf32, #tpu.memory_space<any>>)
    } else {
    }
    return
  }
  func.func @transform_0(%arg0: i32, %arg1: i32) -> (i32, i32) {
    %c0_i32 = arith.constant 0 : i32
    %c0_i32_0 = arith.constant 0 : i32
    %c0_i32_1 = arith.constant 0 : i32
    return %c0_i32, %c0_i32_0 : i32, i32
  }
  func.func @transform_2(%arg0: i32, %arg1: i32) -> (i32, i32, i32) {
    %c0_i32 = arith.constant 0 : i32
    %c0_i32_0 = arith.constant 0 : i32
    %c0_i32_1 = arith.constant 0 : i32
    return %arg0, %c0_i32, %c0_i32_0 : i32, i32, i32
  }
  func.func @transform_3(%arg0: i32, %arg1: i32) -> (i32, i32, i32) {
    %c0_i32 = arith.constant 0 : i32
    %c0_i32_0 = arith.constant 0 : i32
    %c0_i32_1 = arith.constant 0 : i32
    return %arg0, %c0_i32, %c0_i32_0 : i32, i32, i32
  }
}

</mosaic_0001>

<llo_original>
// kernel: tpu_custom_call.1
$region0: #{tpu_custom_call.1}
  #allocation0 [shape = 'u32[]', space=smem, size = 0x4, offset = 0x4, fixed_abs, tag = 'smem constant byte address 0x4 - core index']
  #allocation1 [shape = 'u32[144,128]{1,0:T(1,128)}', space=vmem, size = 0x12000, scoped, tag = 'internal scratch']
  #allocation2 [shape = 'bf16[2,256,128]{2,1,0:T(16,128)(2,1)}', space=vmem, size = 0x20000, scoped, tag = 'scratch operand']
  #allocation3 [shape = 'f32[256,128]{1,0:T(8,128)}', space=vmem, size = 0x20000, scoped, tag = 'scratch operand']
  #allocation4 [shape = 's32[1]{0}', space=sflag, size = 0x4, scoped, tag = 'scratch operand']
  #allocation9 [shape = 's32[]', space=sflag, size = 0x4, offset = 0, fixed_abs, tag = 'sflag constant byte address 0x0 - dummy sync flag']
  #allocation10 [shape = 's32[]', space=sflag, size = 0x4, offset = 0, fixed_abs, tag = 'sflag constant byte address 0x0 - dummy sync flag']
  #allocation11 [shape = 'u32[]', space=smem, size = 0x4, offset = 0x44, fixed_abs, tag = 'smem constant byte address 0x44 - assertion arg 0']
  #allocation12 [shape = 'u32[]', space=smem, size = 0x4, offset = 0x48, fixed_abs, tag = 'smem constant byte address 0x48 - assertion arg 1']
  #allocation13 [shape = 's32[]', space=sflag, size = 0x4, offset = 0, fixed_abs, tag = 'sflag constant byte address 0x0 - dummy sync flag']
  #allocation14 [shape = 's32[]', space=sflag, size = 0x4, offset = 0, fixed_abs, tag = 'sflag constant byte address 0x0 - dummy sync flag']
  %s0 = inlined_call_operand.hbm [shape: s8[256,256], index: 0, kind: input, shape index: {}]
  %s1 = inlined_call_operand.hbm [shape: bf16[256,128], index: 1, kind: input, shape index: {}]
  %s2 = inlined_call_operand.hbm [shape: bf16[2,256,128], index: 2, kind: input, shape index: {}]
  %s3 = inlined_call_operand.vmem [shape: f32[2,3,128], index: 3, kind: input, shape index: {}]
  %s4 = inlined_call_operand.hbm [shape: f32[1,256,128], index: 4, kind: output, shape index: {}]
  %s5 = sld [smem:[#allocation0]]
  $region57: #{tpu_custom_call.1} parent=0
    _
  %s7 = ssub.s32 1, %s5
  %s8 = scalar_select 0, %s7, %s5
  $region1: #{tpu_custom_call.1} parent=0
    #allocation5 [shape = 'u8[65536]{0}', space=vmem, size = 0x10000, scoped, tag = 'input window, operand 0, single buffered']
    #allocation6 [shape = 's32[2]{0}', space=sflag, size = 0x8, scoped, tag = 'scoped memory for tpu_custom_call.1']
    #allocation7 [shape = 'u8[131072]{0}', space=vmem, size = 0x20000, scoped, tag = 'input window, operand 2']
    #allocation8 [shape = 's32[2]{0}', space=sflag, size = 0x8, scoped, tag = 'scoped memory for tpu_custom_call.1']
    %9 = vsyncpa [#allocation6], 0
    %10 = vsyncpa [#allocation8], 0
    %s11 = scalar_lea.sflag [#allocation8], 1
    %12 = vsyncpa %s11, 0
    loop: start=0, step=1, limit=3
    $region2: #{tpu_custom_call.1} parent=1 // loop_pre_header
      _
    $region3: #{tpu_custom_call.1} parent=1 // loop_header
      %s14 = sphi 0, %s18
      %p15 = scmp.ge.s32.totalorder %s14, 3
      %s20 = sphi 0, %s30
      %s21 = sphi 0, %s26
      %s22 = sphi 0, %s20
      %s23 = sphi 0, %s21
      %s31 = sphi 0, %s31
      %s33 = sphi 0, %s31
      %s41 = sphi 0, %s33
      %s47 = sphi 0, %s49
      %s50 = sphi 0, %s47
      %s60 = sphi 0, %s50
      %s66 = sphi 0, %s68
      %s69 = sphi 0, %s66
      %s79 = sphi 0, %s69
    $region4: #{tpu_custom_call.1} parent=1 // loop_header_branch
      %17 = sbr.rel (%p15) target = $region8
    $region5: #{tpu_custom_call.1} parent=1 // loop_body
      %s19 = ssub.s32 %s14, 1
      %s24 = sadd.s32 1, %s21
      %p25 = scmp.ge.s32.totalorder %s24, 1
      %s26 = scalar_select %p25, 0, %s24
      %s27 = sadd.s32 1, %s20
      %s28 = scalar_select %p25, %s27, %s20
      %p29 = scmp.ge.s32.totalorder %s28, 2
      %s30 = scalar_select %p29, 0, %s28
      %s32 = sadd.s32 %s31, 1
      %p34 = scmp.eq.s32.totalorder %s14, 1
      %p35 = scmp.ne.s32.totalorder %s31, %s33
      %p36 = scmp.eq.s32.totalorder %s14, 0
      %p37 = por %p35, %p36
      %p38 = scmp.ne.s32.totalorder %s31, %s33
      %p39 = scmp.eq.s32.totalorder %s19, 1
      %p40 = por %p38, %p39
      %p42 = scmp.ne.s32.totalorder %s33, %s41
      %p43 = scmp.eq.s32.totalorder %s19, 0
      %p44 = por %p42, %p43
      %s45 = ssub.s32 %s20, %s30
      %p46 = scmp.eq.s32.totalorder %s45, 0
      %s48 = sadd.s32 %s47, 1
      %s49 = scalar_select %p46, %s47, %s48
      %p51 = pneg %p46
      %p52 = scmp.eq.s32.totalorder %s14, 1
      %p53 = por %p51, %p52
      %p54 = scmp.ne.s32.totalorder %s47, %s50
      %p55 = scmp.eq.s32.totalorder %s14, 0
      %p56 = por %p54, %p55
      %p57 = scmp.ne.s32.totalorder %s47, %s50
      %p58 = scmp.eq.s32.totalorder %s19, 1
      %p59 = por %p57, %p58
      %p61 = scmp.ne.s32.totalorder %s50, %s60
      %p62 = scmp.eq.s32.totalorder %s19, 0
      %p63 = por %p61, %p62
      %s64 = ssub.s32 %s20, %s30
      %p65 = scmp.eq.s32.totalorder %s64, 0
      %s67 = sadd.s32 %s66, 1
      %s68 = scalar_select %p65, %s66, %s67
      %p70 = pneg %p65
      %p71 = scmp.eq.s32.totalorder %s14, 1
      %p72 = por %p70, %p71
      %p73 = scmp.ne.s32.totalorder %s66, %s69
      %p74 = scmp.eq.s32.totalorder %s14, 0
      %p75 = por %p73, %p74
      %p76 = scmp.ne.s32.totalorder %s66, %s69
      %p77 = scmp.eq.s32.totalorder %s19, 1
      %p78 = por %p76, %p77
      %p80 = scmp.ne.s32.totalorder %s69, %s79
      %p81 = scmp.eq.s32.totalorder %s19, 0
      %p82 = por %p80, %p81
      %p83 = scmp.le.s32.totalorder 1, %s14
      // Predicated region
      $region9: #{tpu_custom_call.1} parent=5 // pred_check
        %p84 = pneg %p83
      $region10: #{tpu_custom_call.1} parent=5 // pred_check_branch
        %86 = sbr.rel (%p84) target = $region12
      $region11: #{tpu_custom_call.1} parent=5 // pred_region
        %s87 = ssub.s32 %s14, 1
        // Predicated region
        $region13: #{tpu_custom_call.1} parent=11 // pred_check
          %p88 = pneg %p44
        $region14: #{tpu_custom_call.1} parent=11 // pred_check_branch
          %90 = sbr.rel (%p88) target = $region16
        $region15: #{tpu_custom_call.1} parent=11 // pred_region
          %s92 = ssub.s32 2048, 2048
          %93 = vsyncadd [#allocation6], %s92
          %s94 = sshll.u32 [#allocation5], 4
          %s95 = int_to_ptr.vmem [resolvable:$true] %s94
          %100 = dma.hbm_to_vmem [thread:$0]  %s0, 2048, %s95, [#allocation6], 256, 256, 16
        $region16: #{tpu_custom_call.1} parent=11 // pred_fallthru
          _
      $region12: #{tpu_custom_call.1} parent=5 // pred_fallthru
        _
      %p101 = scmp.lt.s32.totalorder %s14, 2
      // Predicated region
      $region17: #{tpu_custom_call.1} parent=5 // pred_check
        %p102 = pneg %p101
      $region18: #{tpu_custom_call.1} parent=5 // pred_check_branch
        %104 = sbr.rel (%p102) target = $region20
      $region19: #{tpu_custom_call.1} parent=5 // pred_region
        // Predicated region
        $region21: #{tpu_custom_call.1} parent=19 // pred_check
          %p105 = pneg %p56
        $region22: #{tpu_custom_call.1} parent=19 // pred_check_branch
          %107 = sbr.rel (%p105) target = $region24
        $region23: #{tpu_custom_call.1} parent=19 // pred_region
          %s108 = sand.u32 %s47, 1
          %s109 = scalar_lea.sflag [#allocation8], %s108
          %s110 = sand.u32 %s47, 1
          %s111 = smul.addr %s110, 128
          %s112 = scalar_lea.vmem [#allocation7], %s111
          %s114 = ssub.s32 2048, 2048
          %115 = vsyncadd %s109, %s114
          %s116 = smul.addr %s20, 32
          %s117 = smul.addr %s116, 64
          %s118 = scalar_lea.hbm %s2, %s117
          %s119 = sshll.u32 %s112, 4
          %s120 = int_to_ptr.vmem [resolvable:$true] %s119
          %125 = dma.hbm_to_vmem [thread:$0]  %s118, 2048, %s120, %s109, 64, 64, 4
        $region24: #{tpu_custom_call.1} parent=19 // pred_fallthru
          _
        // Predicated region
        $region25: #{tpu_custom_call.1} parent=19 // pred_check
          %p126 = pneg %p75
        $region26: #{tpu_custom_call.1} parent=19 // pred_check_branch
          %128 = sbr.rel (%p126) target = $region28
        $region27: #{tpu_custom_call.1} parent=19 // pred_region
          %p129 = scmp.lt.s32.totalorder %s20, 1
          %s130 = scalar_select %p129, %s20, 1
          %s131 = smul.addr %s130, 4
          %s132 = scalar_lea.vmem %s3, %s131
        $region28: #{tpu_custom_call.1} parent=19 // pred_fallthru
          _
      $region20: #{tpu_custom_call.1} parent=5 // pred_fallthru
        _
      %p133 = scmp.le.s32.totalorder 1, %s14
      // Predicated region
      $region29: #{tpu_custom_call.1} parent=5 // pred_check
        %p134 = pneg %p133
      $region30: #{tpu_custom_call.1} parent=5 // pred_check_branch
        %136 = sbr.rel (%p134) target = $region32
      $region31: #{tpu_custom_call.1} parent=5 // pred_region
        %s137 = ssub.s32 %s14, 1
        // Predicated region
        $region33: #{tpu_custom_call.1} parent=31 // pred_check
          %p138 = pneg %p44
        $region34: #{tpu_custom_call.1} parent=31 // pred_check_branch
          %140 = sbr.rel (%p138) target = $region36
        $region35: #{tpu_custom_call.1} parent=31 // pred_region
          %141 = dma.done [#allocation6], 2048
        $region36: #{tpu_custom_call.1} parent=31 // pred_fallthru
          _
        %s142 = sand.u32 %s50, 1
        %s143 = scalar_lea.sflag [#allocation8], %s142
        %s144 = sand.u32 %s50, 1
        %s145 = smul.addr %s144, 128
        %s146 = scalar_lea.vmem [#allocation7], %s145
        // Predicated region
        $region37: #{tpu_custom_call.1} parent=31 // pred_check
          %p147 = pneg %p63
        $region38: #{tpu_custom_call.1} parent=31 // pred_check_branch
          %149 = sbr.rel (%p147) target = $region40
        $region39: #{tpu_custom_call.1} parent=31 // pred_region
          %150 = dma.done %s143, 2048
        $region40: #{tpu_custom_call.1} parent=31 // pred_fallthru
          _
        %p151 = pneg %p44
        %p152 = pneg %p40
        %s153 = sand.u32 %s50, 1
        %s154 = scalar_lea.sflag [#allocation8], %s153
        %s155 = sand.u32 %s50, 1
        %s156 = smul.addr %s155, 128
        %s157 = scalar_lea.vmem [#allocation7], %s156
        %p158 = pneg %p63
        %p159 = pneg %p59
        %p160 = scmp.lt.s32.totalorder %s22, 1
        %s161 = scalar_select %p160, %s22, 1
        %s162 = smul.addr %s161, 4
        %s163 = scalar_lea.vmem %s3, %s162
        %p164 = pneg %p82
        %p165 = pneg %p78
        %p166 = scmp.lt.s32.totalorder %s22, 1
        %s167 = scalar_select %p166, %s22, 1
        %s168 = smul.addr %s167, 4
        %s169 = scalar_lea.vmem %s3, %s168
        %p171 = scmp.lt.s32.totalorder %s22, 0
        %s172 = ssub.s32 0, %s22
        %s173 = scalar_select %p171, %s172, %s22
        %s174 = sand.u32 %s173, 1
        %s175 = ssub.s32 0, %s174
        %s176 = scalar_select %p171, %s175, %s174
        %s177 = ssub.s32 1, %s176
        %p178 = scmp.eq.s32.totalorder %s22, 0
        %p179 = scmp.eq.s32.totalorder %s23, 0
        %p180 = pnand %p178, %p179
        %p181 = pneg %p180
        // Predicated region
        $region41: #{tpu_custom_call.1} parent=31 // pred_check
          _
        $region42: #{tpu_custom_call.1} parent=31 // pred_check_branch
          %183 = sbr.rel (%p180) target = $region44
        $region43: #{tpu_custom_call.1} parent=31 // pred_region
          // Predicated region
          $region45: #{tpu_custom_call.1} parent=43 // pred_check
            _
          $region46: #{tpu_custom_call.1} parent=43 // pred_check_branch
            %185 = sbr.rel target = $region48
          $region47: #{tpu_custom_call.1} parent=43 // pred_region
            %186 = sst [smem:[#allocation11]] [#allocation10]
            %187 = sst [smem:[#allocation12]] [#allocation9]
          $region48: #{tpu_custom_call.1} parent=43 // pred_fallthru
            _
          %189 = shalt.err (0)
          %s191 = sshll.u32 [#allocation2], 4
          %s192 = int_to_ptr.vmem [resolvable:$true] %s191
          %194 = dma.hbm_to_vmem [thread:$0]  %s1, 2048, %s192, [#allocation4]
          %s195 = smul.u32 4, 32
          %s196 = smul.u32 %s195, 1
          %s197 = sshll.u32 %s196, 4
          %198 = dma.done [#allocation4], %s197
        $region44: #{tpu_custom_call.1} parent=31 // pred_fallthru
          _
        %s199 = smul.u32 %s23, 256
        %s200 = sshra.s32 %s199, 5
        %s201 = sand.u32 %s199, 31
        %s202 = smul.u32 %s200, 2
        %s203 = smul.addr %s202, 8
        %s204 = scalar_lea.vmem [#allocation5], %s203
        %v205 = vld [vmem:[%s204] sm:$0xff]
        %v206 = vld [vmem:[%s204 + $0x8] sm:$0xff]
        %v207 = vld [vmem:[%s204 + $0x10] sm:$0xff]
        %v208 = vld [vmem:[%s204 + $0x18] sm:$0xff]
        %v209 = vld [vmem:[%s204 + $0x20] sm:$0xff]
        %v210 = vld [vmem:[%s204 + $0x28] sm:$0xff]
        %v211 = vld [vmem:[%s204 + $0x30] sm:$0xff]
        %v212 = vld [vmem:[%s204 + $0x38] sm:$0xff]
        %v213 = vld [vmem:[%s204 + $0x40] sm:$0xff]
        %v214 = vld [vmem:[%s204 + $0x48] sm:$0xff]
        %v215 = vld [vmem:[%s204 + $0x50] sm:$0xff]
        %v216 = vld [vmem:[%s204 + $0x58] sm:$0xff]
        %v217 = vld [vmem:[%s204 + $0x60] sm:$0xff]
        %v218 = vld [vmem:[%s204 + $0x68] sm:$0xff]
        %v219 = vld [vmem:[%s204 + $0x70] sm:$0xff]
        %v220 = vld [vmem:[%s204 + $0x78] sm:$0xff]
        %v221 = vunpack.c.l.s8.bf16 %v205
        %v222 = vunpack.c.l.s8.bf16 %v206
        %v223 = vunpack.c.h.s8.bf16 %v205
        %v224 = vunpack.c.h.s8.bf16 %v206
        %v225 = vunpack.c.l.s8.bf16 %v207
        %v226 = vunpack.c.l.s8.bf16 %v208
        %v227 = vunpack.c.h.s8.bf16 %v207
        %v228 = vunpack.c.h.s8.bf16 %v208
        %v229 = vunpack.c.l.s8.bf16 %v209
        %v230 = vunpack.c.l.s8.bf16 %v210
        %v231 = vunpack.c.h.s8.bf16 %v209
        %v232 = vunpack.c.h.s8.bf16 %v210
        %v233 = vunpack.c.l.s8.bf16 %v211
        %v234 = vunpack.c.l.s8.bf16 %v212
        %v235 = vunpack.c.h.s8.bf16 %v211
        %v236 = vunpack.c.h.s8.bf16 %v212
        %v237 = vunpack.c.l.s8.bf16 %v213
        %v238 = vunpack.c.l.s8.bf16 %v214
        %v239 = vunpack.c.h.s8.bf16 %v213
        %v240 = vunpack.c.h.s8.bf16 %v214
        %v241 = vunpack.c.l.s8.bf16 %v215
        %v242 = vunpack.c.l.s8.bf16 %v216
        %v243 = vunpack.c.h.s8.bf16 %v215
        %v244 = vunpack.c.h.s8.bf16 %v216
        %v245 = vunpack.c.l.s8.bf16 %v217
        %v246 = vunpack.c.l.s8.bf16 %v218
        %v247 = vunpack.c.h.s8.bf16 %v217
        %v248 = vunpack.c.h.s8.bf16 %v218
        %v249 = vunpack.c.l.s8.bf16 %v219
        %v250 = vunpack.c.l.s8.bf16 %v220
        %v251 = vunpack.c.h.s8.bf16 %v219
        %v252 = vunpack.c.h.s8.bf16 %v220
        %s253 = smul.u32 %s176, 16
        %s254 = smul.addr %s253, 8
        %s255 = scalar_lea.vmem [#allocation2], %s254
        %v256 = vld [vmem:[%s255] sm:$0xff]
        %v257 = vld [vmem:[%s255 + $0x8] sm:$0xff]
        %v258 = vld [vmem:[%s255 + $0x10] sm:$0xff]
        %v259 = vld [vmem:[%s255 + $0x18] sm:$0xff]
        %v260 = vld [vmem:[%s255 + $0x20] sm:$0xff]
        %v261 = vld [vmem:[%s255 + $0x28] sm:$0xff]
        %v262 = vld [vmem:[%s255 + $0x30] sm:$0xff]
        %v263 = vld [vmem:[%s255 + $0x38] sm:$0xff]
        %v264 = vld [vmem:[%s255 + $0x40] sm:$0xff]
        %v265 = vld [vmem:[%s255 + $0x48] sm:$0xff]
        %v266 = vld [vmem:[%s255 + $0x50] sm:$0xff]
        %v267 = vld [vmem:[%s255 + $0x58] sm:$0xff]
        %v268 = vld [vmem:[%s255 + $0x60] sm:$0xff]
        %v269 = vld [vmem:[%s255 + $0x68] sm:$0xff]
        %v270 = vld [vmem:[%s255 + $0x70] sm:$0xff]
        %v271 = vld [vmem:[%s255 + $0x78] sm:$0xff]
        %272 = vmatprep.subr.bf16.mxu0 0
        %273 = vmatpush1.bf16.msra.mxu0 %v256
        %274 = vmatprep.subr.bf16.mxu0 0
        %275 = vmatpush1.bf16.msra.mxu0 %v257
        %276 = vmatprep.subr.bf16.mxu0 0
        %277 = vmatpush1.bf16.msra.mxu0 %v258
        %278 = vmatprep.subr.bf16.mxu0 0
        %279 = vmatpush1.bf16.msra.mxu0 %v259
        %280 = vmatprep.subr.bf16.mxu0 0
        %281 = vmatpush1.bf16.msra.mxu0 %v260
        %282 = vmatprep.subr.bf16.mxu0 0
        %283 = vmatpush1.bf16.msra.mxu0 %v261
        %284 = vmatprep.subr.bf16.mxu0 0
        %285 = vmatpush1.bf16.msra.mxu0 %v262
        %286 = vmatprep.subr.bf16.mxu0 0
        %287 = vmatpush1.bf16.msra.mxu0 %v263
        %288 = vmatprep.subr.bf16.mxu0 0
        %289 = vmatpush1.bf16.msra.mxu0 %v264
        %290 = vmatprep.subr.bf16.mxu0 0
        %291 = vmatpush1.bf16.msra.mxu0 %v265
        %292 = vmatprep.subr.bf16.mxu0 0
        %293 = vmatpush1.bf16.msra.mxu0 %v266
        %294 = vmatprep.subr.bf16.mxu0 0
        %295 = vmatpush1.bf16.msra.mxu0 %v267
        %296 = vmatprep.subr.bf16.mxu0 0
        %297 = vmatpush1.bf16.msra.mxu0 %v268
        %298 = vmatprep.subr.bf16.mxu0 0
        %299 = vmatpush1.bf16.msra.mxu0 %v269
        %300 = vmatprep.subr.bf16.mxu0 0
        %301 = vmatpush1.bf16.msra.mxu0 %v270
        %302 = vmatprep.subr.bf16.mxu0 0
        %303 = vmatpush1.bf16.msra.mxu0 %v271
        %304 = vmatprep.mubr.bf16.mxu0 %v222
        %305 = vmatmul.mubr.bf16.gmra.mrb[0].mxu0 %v221
        %v306 = vpop.f32.mrb[0].mxu0
        %v307 = vadd.f32 0.0, %v306
        %v308 = vpop.f32.mrb[0].mxu0
        %v309 = vpop.f32.mrb[0].mxu0
        %v310 = vadd.f32 0.0, %v309
        %v311 = vpop.f32.mrb[0].mxu0
        %312 = vmatprep.mubr.bf16.mxu0 %v224
        %313 = vmatmul.mubr.bf16.gmra.mrb[0].mxu0 %v223
        %v314 = vpop.f32.mrb[0].mxu0
        %v315 = vadd.f32 0.0, %v314
        %v316 = vpop.f32.mrb[0].mxu0
        %v317 = vpop.f32.mrb[0].mxu0
        %v318 = vadd.f32 0.0, %v317
        %v319 = vpop.f32.mrb[0].mxu0
        %320 = vmatprep.mubr.bf16.mxu0 %v226
        %321 = vmatmul.mubr.bf16.gmra.mrb[0].mxu0 %v225
        %v322 = vpop.f32.mrb[0].mxu0
        %v323 = vadd.f32 0.0, %v322
        %v324 = vpop.f32.mrb[0].mxu0
        %v325 = vpop.f32.mrb[0].mxu0
        %v326 = vadd.f32 0.0, %v325
        %v327 = vpop.f32.mrb[0].mxu0
        %328 = vmatprep.mubr.bf16.mxu0 %v228
        %329 = vmatmul.mubr.bf16.gmra.mrb[0].mxu0 %v227
        %v330 = vpop.f32.mrb[0].mxu0
        %v331 = vadd.f32 0.0, %v330
        %v332 = vpop.f32.mrb[0].mxu0
        %v333 = vpop.f32.mrb[0].mxu0
        %v334 = vadd.f32 0.0, %v333
        %v335 = vpop.f32.mrb[0].mxu0
        %336 = vmatprep.mubr.bf16.mxu0 %v230
        %337 = vmatmul.mubr.bf16.gmra.mrb[0].mxu0 %v229
        %v338 = vpop.f32.mrb[0].mxu0
        %v339 = vadd.f32 0.0, %v338
        %v340 = vpop.f32.mrb[0].mxu0
        %v341 = vpop.f32.mrb[0].mxu0
        %v342 = vadd.f32 0.0, %v341
        %v343 = vpop.f32.mrb[0].mxu0
        %344 = vmatprep.mubr.bf16.mxu0 %v232
        %345 = vmatmul.mubr.bf16.gmra.mrb[0].mxu0 %v231
        %v346 = vpop.f32.mrb[0].mxu0
        %v347 = vadd.f32 0.0, %v346
        %v348 = vpop.f32.mrb[0].mxu0
        %v349 = vpop.f32.mrb[0].mxu0
        %v350 = vadd.f32 0.0, %v349
        %v351 = vpop.f32.mrb[0].mxu0
        %352 = vmatprep.mubr.bf16.mxu0 %v234
        %353 = vmatmul.mubr.bf16.gmra.mrb[0].mxu0 %v233
        %v354 = vpop.f32.mrb[0].mxu0
        %v355 = vadd.f32 0.0, %v354
        %v356 = vpop.f32.mrb[0].mxu0
        %v357 = vpop.f32.mrb[0].mxu0
        %v358 = vadd.f32 0.0, %v357
        %v359 = vpop.f32.mrb[0].mxu0
        %360 = vmatprep.mubr.bf16.mxu0 %v236
        %361 = vmatmul.mubr.bf16.gmra.mrb[0].mxu0 %v235
        %v362 = vpop.f32.mrb[0].mxu0
        %v363 = vadd.f32 0.0, %v362
        %v364 = vpop.f32.mrb[0].mxu0
        %v365 = vpop.f32.mrb[0].mxu0
        %v366 = vadd.f32 0.0, %v365
        %v367 = vpop.f32.mrb[0].mxu0
        %368 = vmatprep.mubr.bf16.mxu0 %v238
        %369 = vmatmul.mubr.bf16.gmra.mrb[0].mxu0 %v237
        %v370 = vpop.f32.mrb[0].mxu0
        %v371 = vadd.f32 0.0, %v370
        %v372 = vpop.f32.mrb[0].mxu0
        %v373 = vpop.f32.mrb[0].mxu0
        %v374 = vadd.f32 0.0, %v373
        %v375 = vpop.f32.mrb[0].mxu0
        %376 = vmatprep.mubr.bf16.mxu0 %v240
        %377 = vmatmul.mubr.bf16.gmra.mrb[0].mxu0 %v239
        %v378 = vpop.f32.mrb[0].mxu0
        %v379 = vadd.f32 0.0, %v378
        %v380 = vpop.f32.mrb[0].mxu0
        %v381 = vpop.f32.mrb[0].mxu0
        %v382 = vadd.f32 0.0, %v381
        %v383 = vpop.f32.mrb[0].mxu0
        %384 = vmatprep.mubr.bf16.mxu0 %v242
        %385 = vmatmul.mubr.bf16.gmra.mrb[0].mxu0 %v241
        %v386 = vpop.f32.mrb[0].mxu0
        %v387 = vadd.f32 0.0, %v386
        %v388 = vpop.f32.mrb[0].mxu0
        %v389 = vpop.f32.mrb[0].mxu0
        %v390 = vadd.f32 0.0, %v389
        %v391 = vpop.f32.mrb[0].mxu0
        %392 = vmatprep.mubr.bf16.mxu0 %v244
        %393 = vmatmul.mubr.bf16.gmra.mrb[0].mxu0 %v243
        %v394 = vpop.f32.mrb[0].mxu0
        %v395 = vadd.f32 0.0, %v394
        %v396 = vpop.f32.mrb[0].mxu0
        %v397 = vpop.f32.mrb[0].mxu0
        %v398 = vadd.f32 0.0, %v397
        %v399 = vpop.f32.mrb[0].mxu0
        %400 = vmatprep.mubr.bf16.mxu0 %v246
        %401 = vmatmul.mubr.bf16.gmra.mrb[0].mxu0 %v245
        %v402 = vpop.f32.mrb[0].mxu0
        %v403 = vadd.f32 0.0, %v402
        %v404 = vpop.f32.mrb[0].mxu0
        %v405 = vpop.f32.mrb[0].mxu0
        %v406 = vadd.f32 0.0, %v405
        %v407 = vpop.f32.mrb[0].mxu0
        %408 = vmatprep.mubr.bf16.mxu0 %v248
        %409 = vmatmul.mubr.bf16.gmra.mrb[0].mxu0 %v247
        %v410 = vpop.f32.mrb[0].mxu0
        %v411 = vadd.f32 0.0, %v410
        %v412 = vpop.f32.mrb[0].mxu0
        %v413 = vpop.f32.mrb[0].mxu0
        %v414 = vadd.f32 0.0, %v413
        %v415 = vpop.f32.mrb[0].mxu0
        %416 = vmatprep.mubr.bf16.mxu0 %v250
        %417 = vmatmul.mubr.bf16.gmra.mrb[0].mxu0 %v249
        %v418 = vpop.f32.mrb[0].mxu0
        %v419 = vadd.f32 0.0, %v418
        %v420 = vpop.f32.mrb[0].mxu0
        %v421 = vpop.f32.mrb[0].mxu0
        %v422 = vadd.f32 0.0, %v421
        %v423 = vpop.f32.mrb[0].mxu0
        %424 = vmatprep.mubr.bf16.mxu0 %v252
        %425 = vmatmul.mubr.bf16.gmra.mrb[0].mxu0 %v251
        %v426 = vpop.f32.mrb[0].mxu0
        %v427 = vadd.f32 0.0, %v426
        %v428 = vpop.f32.mrb[0].mxu0
        %v429 = vpop.f32.mrb[0].mxu0
        %v430 = vadd.f32 0.0, %v429
        %v431 = vpop.f32.mrb[0].mxu0
        %432 = vdwg.mxu0
        %s433 = sshra.s32 %s199, 4
        %s434 = sand.u32 %s199, 15
        %s435 = smul.addr %s433, 8
        %s436 = scalar_lea.vmem %s255, %s435 [#allocation2]
        %v437 = vld [vmem:[%s436] sm:$0xff]
        %v438 = vld [vmem:[%s436 + $0x8] sm:$0xff]
        %v439 = vld [vmem:[%s436 + $0x10] sm:$0xff]
        %v440 = vld [vmem:[%s436 + $0x18] sm:$0xff]
        %v441 = vld [vmem:[%s436 + $0x20] sm:$0xff]
        %v442 = vld [vmem:[%s436 + $0x28] sm:$0xff]
        %v443 = vld [vmem:[%s436 + $0x30] sm:$0xff]
        %v444 = vld [vmem:[%s436 + $0x38] sm:$0xff]
        %v445 = vld [vmem:[%s436 + $0x40] sm:$0xff]
        %v446 = vld [vmem:[%s436 + $0x48] sm:$0xff]
        %v447 = vld [vmem:[%s436 + $0x50] sm:$0xff]
        %v448 = vld [vmem:[%s436 + $0x58] sm:$0xff]
        %v449 = vld [vmem:[%s436 + $0x60] sm:$0xff]
        %v450 = vld [vmem:[%s436 + $0x68] sm:$0xff]
        %v451 = vld [vmem:[%s436 + $0x70] sm:$0xff]
        %v452 = vld [vmem:[%s436 + $0x78] sm:$0xff]
        %v453 = vld [vmem:[%s146] sm:$0xf]
        %v454 = vld [vmem:[%s146 + $0x4] sm:$0xf]
        %v455 = vld [vmem:[%s146 + $0x8] sm:$0xf]
        %v456 = vld [vmem:[%s146 + $0xc] sm:$0xf]
        %v457 = vld [vmem:[%s146 + $0x10] sm:$0xf]
        %v458 = vld [vmem:[%s146 + $0x14] sm:$0xf]
        %v459 = vld [vmem:[%s146 + $0x18] sm:$0xf]
        %v460 = vld [vmem:[%s146 + $0x1c] sm:$0xf]
        %v461 = vld [vmem:[%s146 + $0x20] sm:$0xf]
        %v462 = vld [vmem:[%s146 + $0x24] sm:$0xf]
        %v463 = vld [vmem:[%s146 + $0x28] sm:$0xf]
        %v464 = vld [vmem:[%s146 + $0x2c] sm:$0xf]
        %v465 = vld [vmem:[%s146 + $0x30] sm:$0xf]
        %v466 = vld [vmem:[%s146 + $0x34] sm:$0xf]
        %v467 = vld [vmem:[%s146 + $0x38] sm:$0xf]
        %v468 = vld [vmem:[%s146 + $0x3c] sm:$0xf]
        %v469 = vld [vmem:[%s146 + $0x40] sm:$0xf]
        %v470 = vld [vmem:[%s146 + $0x44] sm:$0xf]
        %v471 = vld [vmem:[%s146 + $0x48] sm:$0xf]
        %v472 = vld [vmem:[%s146 + $0x4c] sm:$0xf]
        %v473 = vld [vmem:[%s146 + $0x50] sm:$0xf]
        %v474 = vld [vmem:[%s146 + $0x54] sm:$0xf]
        %v475 = vld [vmem:[%s146 + $0x58] sm:$0xf]
        %v476 = vld [vmem:[%s146 + $0x5c] sm:$0xf]
        %v477 = vld [vmem:[%s146 + $0x60] sm:$0xf]
        %v478 = vld [vmem:[%s146 + $0x64] sm:$0xf]
        %v479 = vld [vmem:[%s146 + $0x68] sm:$0xf]
        %v480 = vld [vmem:[%s146 + $0x6c] sm:$0xf]
        %v481 = vld [vmem:[%s146 + $0x70] sm:$0xf]
        %v482 = vld [vmem:[%s146 + $0x74] sm:$0xf]
        %v483 = vld [vmem:[%s146 + $0x78] sm:$0xf]
        %v484 = vld [vmem:[%s146 + $0x7c] sm:$0xf]
        %v485 = vpack.c.bf16 %v310, %v307
        %v486 = vpack.c.bf16 %v318, %v315
        %v487 = vpack.c.bf16 %v326, %v323
        %v488 = vpack.c.bf16 %v334, %v331
        %v489 = vpack.c.bf16 %v342, %v339
        %v490 = vpack.c.bf16 %v350, %v347
        %v491 = vpack.c.bf16 %v358, %v355
        %v492 = vpack.c.bf16 %v366, %v363
        %v493 = vpack.c.bf16 %v374, %v371
        %v494 = vpack.c.bf16 %v382, %v379
        %v495 = vpack.c.bf16 %v390, %v387
        %v496 = vpack.c.bf16 %v398, %v395
        %v497 = vpack.c.bf16 %v406, %v403
        %v498 = vpack.c.bf16 %v414, %v411
        %v499 = vpack.c.bf16 %v422, %v419
        %v500 = vpack.c.bf16 %v430, %v427
        %v517 = vunpack.c.l.b16 %v469
        %v518 = vunpack.c.l.b16 %v470
        %v519 = vunpack.c.l.b16 %v471
        %v520 = vunpack.c.l.b16 %v472
        %v521 = vunpack.c.l.b16 %v473
        %v522 = vunpack.c.l.b16 %v474
        %v523 = vunpack.c.l.b16 %v475
        %v524 = vunpack.c.l.b16 %v476
        %v525 = vunpack.c.l.b16 %v477
        %v526 = vunpack.c.l.b16 %v478
        %v527 = vunpack.c.l.b16 %v479
        %v528 = vunpack.c.l.b16 %v480
        %v529 = vunpack.c.l.b16 %v481
        %v530 = vunpack.c.l.b16 %v482
        %v531 = vunpack.c.l.b16 %v483
        %v532 = vunpack.c.l.b16 %v484
        %v533 = vpack.c.b16 %v518, %v517
        %v534 = vpack.c.b16 %v520, %v519
        %v535 = vpack.c.b16 %v522, %v521
        %v536 = vpack.c.b16 %v524, %v523
        %v537 = vpack.c.b16 %v526, %v525
        %v538 = vpack.c.b16 %v528, %v527
        %v539 = vpack.c.b16 %v530, %v529
        %v540 = vpack.c.b16 %v532, %v531
        %549 = vmatprep.subr.bf16.mxu0 0
        %550 = vmatpush1.bf16.msra.mxu0 %v533
        %551 = vmatprep.subr.bf16.mxu0 0
        %552 = vmatpush1.bf16.msra.mxu0 %v534
        %553 = vmatprep.subr.bf16.mxu0 0
        %554 = vmatpush1.bf16.msra.mxu0 %v535
        %555 = vmatprep.subr.bf16.mxu0 0
        %556 = vmatpush1.bf16.msra.mxu0 %v536
        %557 = vmatprep.subr.bf16.mxu0 0
        %558 = vmatpush1.bf16.msra.mxu0 %v537
        %559 = vmatprep.subr.bf16.mxu0 0
        %560 = vmatpush1.bf16.msra.mxu0 %v538
        %561 = vmatprep.subr.bf16.mxu0 0
        %562 = vmatpush1.bf16.msra.mxu0 %v539
        %563 = vmatprep.subr.bf16.mxu0 0
        %564 = vmatpush1.bf16.msra.mxu0 %v540
        %565 = vmatprep.subr.bf16.mxu0 0
        %566 = vmatpush1.bf16.msra.mxu0 0
        %567 = vmatprep.subr.bf16.mxu0 0
        %568 = vmatpush1.bf16.msra.mxu0 0
        %569 = vmatprep.subr.bf16.mxu0 0
        %570 = vmatpush1.bf16.msra.mxu0 0
        %571 = vmatprep.subr.bf16.mxu0 0
        %572 = vmatpush1.bf16.msra.mxu0 0
        %573 = vmatprep.subr.bf16.mxu0 0
        %574 = vmatpush1.bf16.msra.mxu0 0
        %575 = vmatprep.subr.bf16.mxu0 0
        %576 = vmatpush1.bf16.msra.mxu0 0
        %577 = vmatprep.subr.bf16.mxu0 0
        %578 = vmatpush1.bf16.msra.mxu0 0
        %579 = vmatprep.subr.bf16.mxu0 0
        %580 = vmatpush1.bf16.msra.mxu0 0
        %581 = vmatprep.mubr.bf16.mxu0 0
        %582 = vmatmul.mubr.bf16.gmra.mrb[0].mxu0 %v485
        %v583 = vpop.f32.mrb[0].mxu0
        %v584 = vadd.f32 0.0, %v583
        %v585 = vpop.f32.mrb[0].mxu0
        %v586 = vpop.f32.mrb[0].mxu0
        %v587 = vadd.f32 0.0, %v586
        %v588 = vpop.f32.mrb[0].mxu0
        %589 = vmatprep.mubr.bf16.mxu0 0
        %590 = vmatmul.mubr.bf16.gmra.mrb[0].mxu0 %v486
        %v591 = vpop.f32.mrb[0].mxu0
        %v592 = vadd.f32 0.0, %v591
        %v593 = vpop.f32.mrb[0].mxu0
        %v594 = vpop.f32.mrb[0].mxu0
        %v595 = vadd.f32 0.0, %v594
        %v596 = vpop.f32.mrb[0].mxu0
        %597 = vmatprep.mubr.bf16.mxu0 0
        %598 = vmatmul.mubr.bf16.gmra.mrb[0].mxu0 %v487
        %v599 = vpop.f32.mrb[0].mxu0
        %v600 = vadd.f32 0.0, %v599
        %v601 = vpop.f32.mrb[0].mxu0
        %v602 = vpop.f32.mrb[0].mxu0
        %v603 = vadd.f32 0.0, %v602
        %v604 = vpop.f32.mrb[0].mxu0
        %605 = vmatprep.mubr.bf16.mxu0 0
        %606 = vmatmul.mubr.bf16.gmra.mrb[0].mxu0 %v488
        %v607 = vpop.f32.mrb[0].mxu0
        %v608 = vadd.f32 0.0, %v607
        %v609 = vpop.f32.mrb[0].mxu0
        %v610 = vpop.f32.mrb[0].mxu0
        %v611 = vadd.f32 0.0, %v610
        %v612 = vpop.f32.mrb[0].mxu0
        %613 = vmatprep.mubr.bf16.mxu0 0
        %614 = vmatmul.mubr.bf16.gmra.mrb[0].mxu0 %v489
        %v615 = vpop.f32.mrb[0].mxu0
        %v616 = vadd.f32 0.0, %v615
        %v617 = vpop.f32.mrb[0].mxu0
        %v618 = vpop.f32.mrb[0].mxu0
        %v619 = vadd.f32 0.0, %v618
        %v620 = vpop.f32.mrb[0].mxu0
        %621 = vmatprep.mubr.bf16.mxu0 0
        %622 = vmatmul.mubr.bf16.gmra.mrb[0].mxu0 %v490
        %v623 = vpop.f32.mrb[0].mxu0
        %v624 = vadd.f32 0.0, %v623
        %v625 = vpop.f32.mrb[0].mxu0
        %v626 = vpop.f32.mrb[0].mxu0
        %v627 = vadd.f32 0.0, %v626
        %v628 = vpop.f32.mrb[0].mxu0
        %629 = vmatprep.mubr.bf16.mxu0 0
        %630 = vmatmul.mubr.bf16.gmra.mrb[0].mxu0 %v491
        %v631 = vpop.f32.mrb[0].mxu0
        %v632 = vadd.f32 0.0, %v631
        %v633 = vpop.f32.mrb[0].mxu0
        %v634 = vpop.f32.mrb[0].mxu0
        %v635 = vadd.f32 0.0, %v634
        %v636 = vpop.f32.mrb[0].mxu0
        %637 = vmatprep.mubr.bf16.mxu0 0
        %638 = vmatmul.mubr.bf16.gmra.mrb[0].mxu0 %v492
        %v639 = vpop.f32.mrb[0].mxu0
        %v640 = vadd.f32 0.0, %v639
        %v641 = vpop.f32.mrb[0].mxu0
        %v642 = vpop.f32.mrb[0].mxu0
        %v643 = vadd.f32 0.0, %v642
        %v644 = vpop.f32.mrb[0].mxu0
        %645 = vmatprep.mubr.bf16.mxu0 0
        %646 = vmatmul.mubr.bf16.gmra.mrb[0].mxu0 %v493
        %v647 = vpop.f32.mrb[0].mxu0
        %v648 = vadd.f32 0.0, %v647
        %v649 = vpop.f32.mrb[0].mxu0
        %v650 = vpop.f32.mrb[0].mxu0
        %v651 = vadd.f32 0.0, %v650
        %v652 = vpop.f32.mrb[0].mxu0
        %653 = vmatprep.mubr.bf16.mxu0 0
        %654 = vmatmul.mubr.bf16.gmra.mrb[0].mxu0 %v494
        %v655 = vpop.f32.mrb[0].mxu0
        %v656 = vadd.f32 0.0, %v655
        %v657 = vpop.f32.mrb[0].mxu0
        %v658 = vpop.f32.mrb[0].mxu0
        %v659 = vadd.f32 0.0, %v658
        %v660 = vpop.f32.mrb[0].mxu0
        %661 = vmatprep.mubr.bf16.mxu0 0
        %662 = vmatmul.mubr.bf16.gmra.mrb[0].mxu0 %v495
        %v663 = vpop.f32.mrb[0].mxu0
        %v664 = vadd.f32 0.0, %v663
        %v665 = vpop.f32.mrb[0].mxu0
        %v666 = vpop.f32.mrb[0].mxu0
        %v667 = vadd.f32 0.0, %v666
        %v668 = vpop.f32.mrb[0].mxu0
        %669 = vmatprep.mubr.bf16.mxu0 0
        %670 = vmatmul.mubr.bf16.gmra.mrb[0].mxu0 %v496
        %v671 = vpop.f32.mrb[0].mxu0
        %v672 = vadd.f32 0.0, %v671
        %v673 = vpop.f32.mrb[0].mxu0
        %v674 = vpop.f32.mrb[0].mxu0
        %v675 = vadd.f32 0.0, %v674
        %v676 = vpop.f32.mrb[0].mxu0
        %677 = vmatprep.mubr.bf16.mxu0 0
        %678 = vmatmul.mubr.bf16.gmra.mrb[0].mxu0 %v497
        %v679 = vpop.f32.mrb[0].mxu0
        %v680 = vadd.f32 0.0, %v679
        %v681 = vpop.f32.mrb[0].mxu0
        %v682 = vpop.f32.mrb[0].mxu0
        %v683 = vadd.f32 0.0, %v682
        %v684 = vpop.f32.mrb[0].mxu0
        %685 = vmatprep.mubr.bf16.mxu0 0
        %686 = vmatmul.mubr.bf16.gmra.mrb[0].mxu0 %v498
        %v687 = vpop.f32.mrb[0].mxu0
        %v688 = vadd.f32 0.0, %v687
        %v689 = vpop.f32.mrb[0].mxu0
        %v690 = vpop.f32.mrb[0].mxu0
        %v691 = vadd.f32 0.0, %v690
        %v692 = vpop.f32.mrb[0].mxu0
        %693 = vmatprep.mubr.bf16.mxu0 0
        %694 = vmatmul.mubr.bf16.gmra.mrb[0].mxu0 %v499
        %v695 = vpop.f32.mrb[0].mxu0
        %v696 = vadd.f32 0.0, %v695
        %v697 = vpop.f32.mrb[0].mxu0
        %v698 = vpop.f32.mrb[0].mxu0
        %v699 = vadd.f32 0.0, %v698
        %v700 = vpop.f32.mrb[0].mxu0
        %701 = vmatprep.mubr.bf16.mxu0 0
        %702 = vmatmul.mubr.bf16.gmra.mrb[0].mxu0 %v500
        %v703 = vpop.f32.mrb[0].mxu0
        %v704 = vadd.f32 0.0, %v703
        %v705 = vpop.f32.mrb[0].mxu0
        %v706 = vpop.f32.mrb[0].mxu0
        %v707 = vadd.f32 0.0, %v706
        %v708 = vpop.f32.mrb[0].mxu0
        %709 = vdwg.mxu0
        %v726 = vunpack.c.l.b16 %v453
        %v727 = vunpack.c.l.b16 %v454
        %v728 = vunpack.c.l.b16 %v455
        %v729 = vunpack.c.l.b16 %v456
        %v730 = vunpack.c.l.b16 %v457
        %v731 = vunpack.c.l.b16 %v458
        %v732 = vunpack.c.l.b16 %v459
        %v733 = vunpack.c.l.b16 %v460
        %v734 = vunpack.c.l.b16 %v461
        %v735 = vunpack.c.l.b16 %v462
        %v736 = vunpack.c.l.b16 %v463
        %v737 = vunpack.c.l.b16 %v464
        %v738 = vunpack.c.l.b16 %v465
        %v739 = vunpack.c.l.b16 %v466
        %v740 = vunpack.c.l.b16 %v467
        %v741 = vunpack.c.l.b16 %v468
        %v742 = vpack.c.b16 %v727, %v726
        %v743 = vpack.c.b16 %v729, %v728
        %v744 = vpack.c.b16 %v731, %v730
        %v745 = vpack.c.b16 %v733, %v732
        %v746 = vpack.c.b16 %v735, %v734
        %v747 = vpack.c.b16 %v737, %v736
        %v748 = vpack.c.b16 %v739, %v738
        %v749 = vpack.c.b16 %v741, %v740
        %758 = vmatprep.subr.bf16.mxu0 0
        %759 = vmatpush1.bf16.msra.mxu0 %v742
        %760 = vmatprep.subr.bf16.mxu0 0
        %761 = vmatpush1.bf16.msra.mxu0 %v743
        %762 = vmatprep.subr.bf16.mxu0 0
        %763 = vmatpush1.bf16.msra.mxu0 %v744
        %764 = vmatprep.subr.bf16.mxu0 0
        %765 = vmatpush1.bf16.msra.mxu0 %v745
        %766 = vmatprep.subr.bf16.mxu0 0
        %767 = vmatpush1.bf16.msra.mxu0 %v746
        %768 = vmatprep.subr.bf16.mxu0 0
        %769 = vmatpush1.bf16.msra.mxu0 %v747
        %770 = vmatprep.subr.bf16.mxu0 0
        %771 = vmatpush1.bf16.msra.mxu0 %v748
        %772 = vmatprep.subr.bf16.mxu0 0
        %773 = vmatpush1.bf16.msra.mxu0 %v749
        %774 = vmatprep.subr.bf16.mxu0 0
        %775 = vmatpush1.bf16.msra.mxu0 0
        %776 = vmatprep.subr.bf16.mxu0 0
        %777 = vmatpush1.bf16.msra.mxu0 0
        %778 = vmatprep.subr.bf16.mxu0 0
        %779 = vmatpush1.bf16.msra.mxu0 0
        %780 = vmatprep.subr.bf16.mxu0 0
        %781 = vmatpush1.bf16.msra.mxu0 0
        %782 = vmatprep.subr.bf16.mxu0 0
        %783 = vmatpush1.bf16.msra.mxu0 0
        %784 = vmatprep.subr.bf16.mxu0 0
        %785 = vmatpush1.bf16.msra.mxu0 0
        %786 = vmatprep.subr.bf16.mxu0 0
        %787 = vmatpush1.bf16.msra.mxu0 0
        %788 = vmatprep.subr.bf16.mxu0 0
        %789 = vmatpush1.bf16.msra.mxu0 0
        %790 = vmatprep.mubr.bf16.mxu0 0
        %791 = vmatmul.mubr.bf16.gmra.mrb[0].mxu0 %v437
        %v792 = vpop.f32.mrb[0].mxu0
        %v793 = vadd.f32 %v584, %v792
        %v794 = vpop.f32.mrb[0].mxu0
        %v795 = vpop.f32.mrb[0].mxu0
        %v796 = vadd.f32 %v587, %v795
        %v797 = vpop.f32.mrb[0].mxu0
        %798 = vmatprep.mubr.bf16.mxu0 0
        %799 = vmatmul.mubr.bf16.gmra.mrb[0].mxu0 %v438
        %v800 = vpop.f32.mrb[0].mxu0
        %v801 = vadd.f32 %v592, %v800
        %v802 = vpop.f32.mrb[0].mxu0
        %v803 = vpop.f32.mrb[0].mxu0
        %v804 = vadd.f32 %v595, %v803
        %v805 = vpop.f32.mrb[0].mxu0
        %806 = vmatprep.mubr.bf16.mxu0 0
        %807 = vmatmul.mubr.bf16.gmra.mrb[0].mxu0 %v439
        %v808 = vpop.f32.mrb[0].mxu0
        %v809 = vadd.f32 %v600, %v808
        %v810 = vpop.f32.mrb[0].mxu0
        %v811 = vpop.f32.mrb[0].mxu0
        %v812 = vadd.f32 %v603, %v811
        %v813 = vpop.f32.mrb[0].mxu0
        %814 = vmatprep.mubr.bf16.mxu0 0
        %815 = vmatmul.mubr.bf16.gmra.mrb[0].mxu0 %v440
        %v816 = vpop.f32.mrb[0].mxu0
        %v817 = vadd.f32 %v608, %v816
        %v818 = vpop.f32.mrb[0].mxu0
        %v819 = vpop.f32.mrb[0].mxu0
        %v820 = vadd.f32 %v611, %v819
        %v821 = vpop.f32.mrb[0].mxu0
        %822 = vmatprep.mubr.bf16.mxu0 0
        %823 = vmatmul.mubr.bf16.gmra.mrb[0].mxu0 %v441
        %v824 = vpop.f32.mrb[0].mxu0
        %v825 = vadd.f32 %v616, %v824
        %v826 = vpop.f32.mrb[0].mxu0
        %v827 = vpop.f32.mrb[0].mxu0
        %v828 = vadd.f32 %v619, %v827
        %v829 = vpop.f32.mrb[0].mxu0
        %830 = vmatprep.mubr.bf16.mxu0 0
        %831 = vmatmul.mubr.bf16.gmra.mrb[0].mxu0 %v442
        %v832 = vpop.f32.mrb[0].mxu0
        %v833 = vadd.f32 %v624, %v832
        %v834 = vpop.f32.mrb[0].mxu0
        %v835 = vpop.f32.mrb[0].mxu0
        %v836 = vadd.f32 %v627, %v835
        %v837 = vpop.f32.mrb[0].mxu0
        %838 = vmatprep.mubr.bf16.mxu0 0
        %839 = vmatmul.mubr.bf16.gmra.mrb[0].mxu0 %v443
        %v840 = vpop.f32.mrb[0].mxu0
        %v841 = vadd.f32 %v632, %v840
        %v842 = vpop.f32.mrb[0].mxu0
        %v843 = vpop.f32.mrb[0].mxu0
        %v844 = vadd.f32 %v635, %v843
        %v845 = vpop.f32.mrb[0].mxu0
        %846 = vmatprep.mubr.bf16.mxu0 0
        %847 = vmatmul.mubr.bf16.gmra.mrb[0].mxu0 %v444
        %v848 = vpop.f32.mrb[0].mxu0
        %v849 = vadd.f32 %v640, %v848
        %v850 = vpop.f32.mrb[0].mxu0
        %v851 = vpop.f32.mrb[0].mxu0
        %v852 = vadd.f32 %v643, %v851
        %v853 = vpop.f32.mrb[0].mxu0
        %854 = vmatprep.mubr.bf16.mxu0 0
        %855 = vmatmul.mubr.bf16.gmra.mrb[0].mxu0 %v445
        %v856 = vpop.f32.mrb[0].mxu0
        %v857 = vadd.f32 %v648, %v856
        %v858 = vpop.f32.mrb[0].mxu0
        %v859 = vpop.f32.mrb[0].mxu0
        %v860 = vadd.f32 %v651, %v859
        %v861 = vpop.f32.mrb[0].mxu0
        %862 = vmatprep.mubr.bf16.mxu0 0
        %863 = vmatmul.mubr.bf16.gmra.mrb[0].mxu0 %v446
        %v864 = vpop.f32.mrb[0].mxu0
        %v865 = vadd.f32 %v656, %v864
        %v866 = vpop.f32.mrb[0].mxu0
        %v867 = vpop.f32.mrb[0].mxu0
        %v868 = vadd.f32 %v659, %v867
        %v869 = vpop.f32.mrb[0].mxu0
        %870 = vmatprep.mubr.bf16.mxu0 0
        %871 = vmatmul.mubr.bf16.gmra.mrb[0].mxu0 %v447
        %v872 = vpop.f32.mrb[0].mxu0
        %v873 = vadd.f32 %v664, %v872
        %v874 = vpop.f32.mrb[0].mxu0
        %v875 = vpop.f32.mrb[0].mxu0
        %v876 = vadd.f32 %v667, %v875
        %v877 = vpop.f32.mrb[0].mxu0
        %878 = vmatprep.mubr.bf16.mxu0 0
        %879 = vmatmul.mubr.bf16.gmra.mrb[0].mxu0 %v448
        %v880 = vpop.f32.mrb[0].mxu0
        %v881 = vadd.f32 %v672, %v880
        %v882 = vpop.f32.mrb[0].mxu0
        %v883 = vpop.f32.mrb[0].mxu0
        %v884 = vadd.f32 %v675, %v883
        %v885 = vpop.f32.mrb[0].mxu0
        %886 = vmatprep.mubr.bf16.mxu0 0
        %887 = vmatmul.mubr.bf16.gmra.mrb[0].mxu0 %v449
        %v888 = vpop.f32.mrb[0].mxu0
        %v889 = vadd.f32 %v680, %v888
        %v890 = vpop.f32.mrb[0].mxu0
        %v891 = vpop.f32.mrb[0].mxu0
        %v892 = vadd.f32 %v683, %v891
        %v893 = vpop.f32.mrb[0].mxu0
        %894 = vmatprep.mubr.bf16.mxu0 0
        %895 = vmatmul.mubr.bf16.gmra.mrb[0].mxu0 %v450
        %v896 = vpop.f32.mrb[0].mxu0
        %v897 = vadd.f32 %v688, %v896
        %v898 = vpop.f32.mrb[0].mxu0
        %v899 = vpop.f32.mrb[0].mxu0
        %v900 = vadd.f32 %v691, %v899
        %v901 = vpop.f32.mrb[0].mxu0
        %902 = vmatprep.mubr.bf16.mxu0 0
        %903 = vmatmul.mubr.bf16.gmra.mrb[0].mxu0 %v451
        %v904 = vpop.f32.mrb[0].mxu0
        %v905 = vadd.f32 %v696, %v904
        %v906 = vpop.f32.mrb[0].mxu0
        %v907 = vpop.f32.mrb[0].mxu0
        %v908 = vadd.f32 %v699, %v907
        %v909 = vpop.f32.mrb[0].mxu0
        %910 = vmatprep.mubr.bf16.mxu0 0
        %911 = vmatmul.mubr.bf16.gmra.mrb[0].mxu0 %v452
        %v912 = vpop.f32.mrb[0].mxu0
        %v913 = vadd.f32 %v704, %v912
        %v914 = vpop.f32.mrb[0].mxu0
        %v915 = vpop.f32.mrb[0].mxu0
        %v916 = vadd.f32 %v707, %v915
        %v917 = vpop.f32.mrb[0].mxu0
        %918 = vdwg.mxu0
        %v919 = vld [vmem:[%s169] sm:$0x1]
        %v920 = vlaneseq
        %v921 = vshrl.u32 %v920, 7
        %v922 = vsub.s32 0, %v921
        %v923 = vrot.slane %v919, %v922
        %v924 = vadd.f32 %v793, %v923
        %v925 = vadd.f32 %v796, %v923
        %v926 = vadd.f32 %v801, %v923
        %v927 = vadd.f32 %v804, %v923
        %v928 = vadd.f32 %v809, %v923
        %v929 = vadd.f32 %v812, %v923
        %v930 = vadd.f32 %v817, %v923
        %v931 = vadd.f32 %v820, %v923
        %v932 = vadd.f32 %v825, %v923
        %v933 = vadd.f32 %v828, %v923
        %v934 = vadd.f32 %v833, %v923
        %v935 = vadd.f32 %v836, %v923
        %v936 = vadd.f32 %v841, %v923
        %v937 = vadd.f32 %v844, %v923
        %v938 = vadd.f32 %v849, %v923
        %v939 = vadd.f32 %v852, %v923
        %v940 = vadd.f32 %v857, %v923
        %v941 = vadd.f32 %v860, %v923
        %v942 = vadd.f32 %v865, %v923
        %v943 = vadd.f32 %v868, %v923
        %v944 = vadd.f32 %v873, %v923
        %v945 = vadd.f32 %v876, %v923
        %v946 = vadd.f32 %v881, %v923
        %v947 = vadd.f32 %v884, %v923
        %v948 = vadd.f32 %v889, %v923
        %v949 = vadd.f32 %v892, %v923
        %v950 = vadd.f32 %v897, %v923
        %v951 = vadd.f32 %v900, %v923
        %v952 = vadd.f32 %v905, %v923
        %v953 = vadd.f32 %v908, %v923
        %v954 = vadd.f32 %v913, %v923
        %v955 = vadd.f32 %v916, %v923
        %956 = vadd.xlane.f32.xlu0 %v924
        %v957 = vpop.xlane.xlu0 %956
        %958 = vadd.xlane.f32.xlu0 %v925
        %v959 = vpop.xlane.xlu0 %958
        %960 = vadd.xlane.f32.xlu0 %v926
        %v961 = vpop.xlane.xlu0 %960
        %962 = vadd.xlane.f32.xlu0 %v927
        %v963 = vpop.xlane.xlu0 %962
        %964 = vadd.xlane.f32.xlu0 %v928
        %v965 = vpop.xlane.xlu0 %964
        %966 = vadd.xlane.f32.xlu0 %v929
        %v967 = vpop.xlane.xlu0 %966
        %968 = vadd.xlane.f32.xlu0 %v930
        %v969 = vpop.xlane.xlu0 %968
        %970 = vadd.xlane.f32.xlu0 %v931
        %v971 = vpop.xlane.xlu0 %970
        %972 = vadd.xlane.f32.xlu0 %v932
        %v973 = vpop.xlane.xlu0 %972
        %974 = vadd.xlane.f32.xlu0 %v933
        %v975 = vpop.xlane.xlu0 %974
        %976 = vadd.xlane.f32.xlu0 %v934
        %v977 = vpop.xlane.xlu0 %976
        %978 = vadd.xlane.f32.xlu0 %v935
        %v979 = vpop.xlane.xlu0 %978
        %980 = vadd.xlane.f32.xlu0 %v936
        %v981 = vpop.xlane.xlu0 %980
        %982 = vadd.xlane.f32.xlu0 %v937
        %v983 = vpop.xlane.xlu0 %982
        %984 = vadd.xlane.f32.xlu0 %v938
        %v985 = vpop.xlane.xlu0 %984
        %986 = vadd.xlane.f32.xlu0 %v939
        %v987 = vpop.xlane.xlu0 %986
        %988 = vadd.xlane.f32.xlu0 %v940
        %v989 = vpop.xlane.xlu0 %988
        %990 = vadd.xlane.f32.xlu0 %v941
        %v991 = vpop.xlane.xlu0 %990
        %992 = vadd.xlane.f32.xlu0 %v942
        %v993 = vpop.xlane.xlu0 %992
        %994 = vadd.xlane.f32.xlu0 %v943
        %v995 = vpop.xlane.xlu0 %994
        %996 = vadd.xlane.f32.xlu0 %v944
        %v997 = vpop.xlane.xlu0 %996
        %998 = vadd.xlane.f32.xlu0 %v945
        %v999 = vpop.xlane.xlu0 %998
        %1000 = vadd.xlane.f32.xlu0 %v946
        %v1001 = vpop.xlane.xlu0 %1000
        %1002 = vadd.xlane.f32.xlu0 %v947
        %v1003 = vpop.xlane.xlu0 %1002
        %1004 = vadd.xlane.f32.xlu0 %v948
        %v1005 = vpop.xlane.xlu0 %1004
        %1006 = vadd.xlane.f32.xlu0 %v949
        %v1007 = vpop.xlane.xlu0 %1006
        %1008 = vadd.xlane.f32.xlu0 %v950
        %v1009 = vpop.xlane.xlu0 %1008
        %1010 = vadd.xlane.f32.xlu0 %v951
        %v1011 = vpop.xlane.xlu0 %1010
        %1012 = vadd.xlane.f32.xlu0 %v952
        %v1013 = vpop.xlane.xlu0 %1012
        %1014 = vadd.xlane.f32.xlu0 %v953
        %v1015 = vpop.xlane.xlu0 %1014
        %1016 = vadd.xlane.f32.xlu0 %v954
        %v1017 = vpop.xlane.xlu0 %1016
        %1018 = vadd.xlane.f32.xlu0 %v955
        %v1019 = vpop.xlane.xlu0 %1018
        %v1020 = vrcp.pop 128.0
        %v1021 = vmul.f32 %v957, %v1020
        %v1022 = vmul.f32 %v959, %v1020
        %v1023 = vmul.f32 %v961, %v1020
        %v1024 = vmul.f32 %v963, %v1020
        %v1025 = vmul.f32 %v965, %v1020
        %v1026 = vmul.f32 %v967, %v1020
        %v1027 = vmul.f32 %v969, %v1020
        %v1028 = vmul.f32 %v971, %v1020
        %v1029 = vmul.f32 %v973, %v1020
        %v1030 = vmul.f32 %v975, %v1020
        %v1031 = vmul.f32 %v977, %v1020
        %v1032 = vmul.f32 %v979, %v1020
        %v1033 = vmul.f32 %v981, %v1020
        %v1034 = vmul.f32 %v983, %v1020
        %v1035 = vmul.f32 %v985, %v1020
        %v1036 = vmul.f32 %v987, %v1020
        %v1037 = vmul.f32 %v989, %v1020
        %v1038 = vmul.f32 %v991, %v1020
        %v1039 = vmul.f32 %v993, %v1020
        %v1040 = vmul.f32 %v995, %v1020
        %v1041 = vmul.f32 %v997, %v1020
        %v1042 = vmul.f32 %v999, %v1020
        %v1043 = vmul.f32 %v1001, %v1020
        %v1044 = vmul.f32 %v1003, %v1020
        %v1045 = vmul.f32 %v1005, %v1020
        %v1046 = vmul.f32 %v1007, %v1020
        %v1047 = vmul.f32 %v1009, %v1020
        %v1048 = vmul.f32 %v1011, %v1020
        %v1049 = vmul.f32 %v1013, %v1020
        %v1050 = vmul.f32 %v1015, %v1020
        %v1051 = vmul.f32 %v1017, %v1020
        %v1052 = vmul.f32 %v1019, %v1020
        %v1053 = vsub.f32 %v924, %v1021
        %v1054 = vsub.f32 %v925, %v1022
        %v1055 = vsub.f32 %v926, %v1023
        %v1056 = vsub.f32 %v927, %v1024
        %v1057 = vsub.f32 %v928, %v1025
        %v1058 = vsub.f32 %v929, %v1026
        %v1059 = vsub.f32 %v930, %v1027
        %v1060 = vsub.f32 %v931, %v1028
        %v1061 = vsub.f32 %v932, %v1029
        %v1062 = vsub.f32 %v933, %v1030
        %v1063 = vsub.f32 %v934, %v1031
        %v1064 = vsub.f32 %v935, %v1032
        %v1065 = vsub.f32 %v936, %v1033
        %v1066 = vsub.f32 %v937, %v1034
        %v1067 = vsub.f32 %v938, %v1035
        %v1068 = vsub.f32 %v939, %v1036
        %v1069 = vsub.f32 %v940, %v1037
        %v1070 = vsub.f32 %v941, %v1038
        %v1071 = vsub.f32 %v942, %v1039
        %v1072 = vsub.f32 %v943, %v1040
        %v1073 = vsub.f32 %v944, %v1041
        %v1074 = vsub.f32 %v945, %v1042
        %v1075 = vsub.f32 %v946, %v1043
        %v1076 = vsub.f32 %v947, %v1044
        %v1077 = vsub.f32 %v948, %v1045
        %v1078 = vsub.f32 %v949, %v1046
        %v1079 = vsub.f32 %v950, %v1047
        %v1080 = vsub.f32 %v951, %v1048
        %v1081 = vsub.f32 %v952, %v1049
        %v1082 = vsub.f32 %v953, %v1050
        %v1083 = vsub.f32 %v954, %v1051
        %v1084 = vsub.f32 %v955, %v1052
        %v1085 = vmul.f32 %v1053, %v1053
        %v1086 = vmul.f32 %v1054, %v1054
        %v1087 = vmul.f32 %v1055, %v1055
        %v1088 = vmul.f32 %v1056, %v1056
        %v1089 = vmul.f32 %v1057, %v1057
        %v1090 = vmul.f32 %v1058, %v1058
        %v1091 = vmul.f32 %v1059, %v1059
        %v1092 = vmul.f32 %v1060, %v1060
        %v1093 = vmul.f32 %v1061, %v1061
        %v1094 = vmul.f32 %v1062, %v1062
        %v1095 = vmul.f32 %v1063, %v1063
        %v1096 = vmul.f32 %v1064, %v1064
        %v1097 = vmul.f32 %v1065, %v1065
        %v1098 = vmul.f32 %v1066, %v1066
        %v1099 = vmul.f32 %v1067, %v1067
        %v1100 = vmul.f32 %v1068, %v1068
        %v1101 = vmul.f32 %v1069, %v1069
        %v1102 = vmul.f32 %v1070, %v1070
        %v1103 = vmul.f32 %v1071, %v1071
        %v1104 = vmul.f32 %v1072, %v1072
        %v1105 = vmul.f32 %v1073, %v1073
        %v1106 = vmul.f32 %v1074, %v1074
        %v1107 = vmul.f32 %v1075, %v1075
        %v1108 = vmul.f32 %v1076, %v1076
        %v1109 = vmul.f32 %v1077, %v1077
        %v1110 = vmul.f32 %v1078, %v1078
        %v1111 = vmul.f32 %v1079, %v1079
        %v1112 = vmul.f32 %v1080, %v1080
        %v1113 = vmul.f32 %v1081, %v1081
        %v1114 = vmul.f32 %v1082, %v1082
        %v1115 = vmul.f32 %v1083, %v1083
        %v1116 = vmul.f32 %v1084, %v1084
        %1117 = vadd.xlane.f32.xlu0 %v1085
        %v1118 = vpop.xlane.xlu0 %1117
        %1119 = vadd.xlane.f32.xlu0 %v1086
        %v1120 = vpop.xlane.xlu0 %1119
        %1121 = vadd.xlane.f32.xlu0 %v1087
        %v1122 = vpop.xlane.xlu0 %1121
        %1123 = vadd.xlane.f32.xlu0 %v1088
        %v1124 = vpop.xlane.xlu0 %1123
        %1125 = vadd.xlane.f32.xlu0 %v1089
        %v1126 = vpop.xlane.xlu0 %1125
        %1127 = vadd.xlane.f32.xlu0 %v1090
        %v1128 = vpop.xlane.xlu0 %1127
        %1129 = vadd.xlane.f32.xlu0 %v1091
        %v1130 = vpop.xlane.xlu0 %1129
        %1131 = vadd.xlane.f32.xlu0 %v1092
        %v1132 = vpop.xlane.xlu0 %1131
        %1133 = vadd.xlane.f32.xlu0 %v1093
        %v1134 = vpop.xlane.xlu0 %1133
        %1135 = vadd.xlane.f32.xlu0 %v1094
        %v1136 = vpop.xlane.xlu0 %1135
        %1137 = vadd.xlane.f32.xlu0 %v1095
        %v1138 = vpop.xlane.xlu0 %1137
        %1139 = vadd.xlane.f32.xlu0 %v1096
        %v1140 = vpop.xlane.xlu0 %1139
        %1141 = vadd.xlane.f32.xlu0 %v1097
        %v1142 = vpop.xlane.xlu0 %1141
        %1143 = vadd.xlane.f32.xlu0 %v1098
        %v1144 = vpop.xlane.xlu0 %1143
        %1145 = vadd.xlane.f32.xlu0 %v1099
        %v1146 = vpop.xlane.xlu0 %1145
        %1147 = vadd.xlane.f32.xlu0 %v1100
        %v1148 = vpop.xlane.xlu0 %1147
        %1149 = vadd.xlane.f32.xlu0 %v1101
        %v1150 = vpop.xlane.xlu0 %1149
        %1151 = vadd.xlane.f32.xlu0 %v1102
        %v1152 = vpop.xlane.xlu0 %1151
        %1153 = vadd.xlane.f32.xlu0 %v1103
        %v1154 = vpop.xlane.xlu0 %1153
        %1155 = vadd.xlane.f32.xlu0 %v1104
        %v1156 = vpop.xlane.xlu0 %1155
        %1157 = vadd.xlane.f32.xlu0 %v1105
        %v1158 = vpop.xlane.xlu0 %1157
        %1159 = vadd.xlane.f32.xlu0 %v1106
        %v1160 = vpop.xlane.xlu0 %1159
        %1161 = vadd.xlane.f32.xlu0 %v1107
        %v1162 = vpop.xlane.xlu0 %1161
        %1163 = vadd.xlane.f32.xlu0 %v1108
        %v1164 = vpop.xlane.xlu0 %1163
        %1165 = vadd.xlane.f32.xlu0 %v1109
        %v1166 = vpop.xlane.xlu0 %1165
        %1167 = vadd.xlane.f32.xlu0 %v1110
        %v1168 = vpop.xlane.xlu0 %1167
        %1169 = vadd.xlane.f32.xlu0 %v1111
        %v1170 = vpop.xlane.xlu0 %1169
        %1171 = vadd.xlane.f32.xlu0 %v1112
        %v1172 = vpop.xlane.xlu0 %1171
        %1173 = vadd.xlane.f32.xlu0 %v1113
        %v1174 = vpop.xlane.xlu0 %1173
        %1175 = vadd.xlane.f32.xlu0 %v1114
        %v1176 = vpop.xlane.xlu0 %1175
        %1177 = vadd.xlane.f32.xlu0 %v1115
        %v1178 = vpop.xlane.xlu0 %1177
        %1179 = vadd.xlane.f32.xlu0 %v1116
        %v1180 = vpop.xlane.xlu0 %1179
        %v1181 = vmul.f32 %v1118, %v1020
        %v1182 = vmul.f32 %v1120, %v1020
        %v1183 = vmul.f32 %v1122, %v1020
        %v1184 = vmul.f32 %v1124, %v1020
        %v1185 = vmul.f32 %v1126, %v1020
        %v1186 = vmul.f32 %v1128, %v1020
        %v1187 = vmul.f32 %v1130, %v1020
        %v1188 = vmul.f32 %v1132, %v1020
        %v1189 = vmul.f32 %v1134, %v1020
        %v1190 = vmul.f32 %v1136, %v1020
        %v1191 = vmul.f32 %v1138, %v1020
        %v1192 = vmul.f32 %v1140, %v1020
        %v1193 = vmul.f32 %v1142, %v1020
        %v1194 = vmul.f32 %v1144, %v1020
        %v1195 = vmul.f32 %v1146, %v1020
        %v1196 = vmul.f32 %v1148, %v1020
        %v1197 = vmul.f32 %v1150, %v1020
        %v1198 = vmul.f32 %v1152, %v1020
        %v1199 = vmul.f32 %v1154, %v1020
        %v1200 = vmul.f32 %v1156, %v1020
        %v1201 = vmul.f32 %v1158, %v1020
        %v1202 = vmul.f32 %v1160, %v1020
        %v1203 = vmul.f32 %v1162, %v1020
        %v1204 = vmul.f32 %v1164, %v1020
        %v1205 = vmul.f32 %v1166, %v1020
        %v1206 = vmul.f32 %v1168, %v1020
        %v1207 = vmul.f32 %v1170, %v1020
        %v1208 = vmul.f32 %v1172, %v1020
        %v1209 = vmul.f32 %v1174, %v1020
        %v1210 = vmul.f32 %v1176, %v1020
        %v1211 = vmul.f32 %v1178, %v1020
        %v1212 = vmul.f32 %v1180, %v1020
        %v1213 = vadd.f32 %v1181, 1e-05
        %v1214 = vadd.f32 %v1182, 1e-05
        %v1215 = vadd.f32 %v1183, 1e-05
        %v1216 = vadd.f32 %v1184, 1e-05
        %v1217 = vadd.f32 %v1185, 1e-05
        %v1218 = vadd.f32 %v1186, 1e-05
        %v1219 = vadd.f32 %v1187, 1e-05
        %v1220 = vadd.f32 %v1188, 1e-05
        %v1221 = vadd.f32 %v1189, 1e-05
        %v1222 = vadd.f32 %v1190, 1e-05
        %v1223 = vadd.f32 %v1191, 1e-05
        %v1224 = vadd.f32 %v1192, 1e-05
        %v1225 = vadd.f32 %v1193, 1e-05
        %v1226 = vadd.f32 %v1194, 1e-05
        %v1227 = vadd.f32 %v1195, 1e-05
        %v1228 = vadd.f32 %v1196, 1e-05
        %v1229 = vadd.f32 %v1197, 1e-05
        %v1230 = vadd.f32 %v1198, 1e-05
        %v1231 = vadd.f32 %v1199, 1e-05
        %v1232 = vadd.f32 %v1200, 1e-05
        %v1233 = vadd.f32 %v1201, 1e-05
        %v1234 = vadd.f32 %v1202, 1e-05
        %v1235 = vadd.f32 %v1203, 1e-05
        %v1236 = vadd.f32 %v1204, 1e-05
        %v1237 = vadd.f32 %v1205, 1e-05
        %v1238 = vadd.f32 %v1206, 1e-05
        %v1239 = vadd.f32 %v1207, 1e-05
        %v1240 = vadd.f32 %v1208, 1e-05
        %v1241 = vadd.f32 %v1209, 1e-05
        %v1242 = vadd.f32 %v1210, 1e-05
        %v1243 = vadd.f32 %v1211, 1e-05
        %v1244 = vadd.f32 %v1212, 1e-05
        %v1245 = vrsqrt.pop %v1213
        %v1246 = vrsqrt.pop %v1214
        %v1247 = vrsqrt.pop %v1215
        %v1248 = vrsqrt.pop %v1216
        %v1249 = vrsqrt.pop %v1217
        %v1250 = vrsqrt.pop %v1218
        %v1251 = vrsqrt.pop %v1219
        %v1252 = vrsqrt.pop %v1220
        %v1253 = vrsqrt.pop %v1221
        %v1254 = vrsqrt.pop %v1222
        %v1255 = vrsqrt.pop %v1223
        %v1256 = vrsqrt.pop %v1224
        %v1257 = vrsqrt.pop %v1225
        %v1258 = vrsqrt.pop %v1226
        %v1259 = vrsqrt.pop %v1227
        %v1260 = vrsqrt.pop %v1228
        %v1261 = vrsqrt.pop %v1229
        %v1262 = vrsqrt.pop %v1230
        %v1263 = vrsqrt.pop %v1231
        %v1264 = vrsqrt.pop %v1232
        %v1265 = vrsqrt.pop %v1233
        %v1266 = vrsqrt.pop %v1234
        %v1267 = vrsqrt.pop %v1235
        %v1268 = vrsqrt.pop %v1236
        %v1269 = vrsqrt.pop %v1237
        %v1270 = vrsqrt.pop %v1238
        %v1271 = vrsqrt.pop %v1239
        %v1272 = vrsqrt.pop %v1240
        %v1273 = vrsqrt.pop %v1241
        %v1274 = vrsqrt.pop %v1242
        %v1275 = vrsqrt.pop %v1243
        %v1276 = vrsqrt.pop %v1244
        %v1277 = vmul.f32 %v1053, %v1245
        %v1278 = vmul.f32 %v1054, %v1246
        %v1279 = vmul.f32 %v1055, %v1247
        %v1280 = vmul.f32 %v1056, %v1248
        %v1281 = vmul.f32 %v1057, %v1249
        %v1282 = vmul.f32 %v1058, %v1250
        %v1283 = vmul.f32 %v1059, %v1251
        %v1284 = vmul.f32 %v1060, %v1252
        %v1285 = vmul.f32 %v1061, %v1253
        %v1286 = vmul.f32 %v1062, %v1254
        %v1287 = vmul.f32 %v1063, %v1255
        %v1288 = vmul.f32 %v1064, %v1256
        %v1289 = vmul.f32 %v1065, %v1257
        %v1290 = vmul.f32 %v1066, %v1258
        %v1291 = vmul.f32 %v1067, %v1259
        %v1292 = vmul.f32 %v1068, %v1260
        %v1293 = vmul.f32 %v1069, %v1261
        %v1294 = vmul.f32 %v1070, %v1262
        %v1295 = vmul.f32 %v1071, %v1263
        %v1296 = vmul.f32 %v1072, %v1264
        %v1297 = vmul.f32 %v1073, %v1265
        %v1298 = vmul.f32 %v1074, %v1266
        %v1299 = vmul.f32 %v1075, %v1267
        %v1300 = vmul.f32 %v1076, %v1268
        %v1301 = vmul.f32 %v1077, %v1269
        %v1302 = vmul.f32 %v1078, %v1270
        %v1303 = vmul.f32 %v1079, %v1271
        %v1304 = vmul.f32 %v1080, %v1272
        %v1305 = vmul.f32 %v1081, %v1273
        %v1306 = vmul.f32 %v1082, %v1274
        %v1307 = vmul.f32 %v1083, %v1275
        %v1308 = vmul.f32 %v1084, %v1276
        %v1309 = vld [vmem:[%s169 + $0x1] sm:$0x1]
        %v1310 = vlaneseq
        %v1311 = vshrl.u32 %v1310, 7
        %v1312 = vsub.s32 0, %v1311
        %v1313 = vrot.slane %v1309, %v1312
        %v1314 = vmul.f32 %v1277, %v1313
        %v1315 = vmul.f32 %v1278, %v1313
        %v1316 = vmul.f32 %v1279, %v1313
        %v1317 = vmul.f32 %v1280, %v1313
        %v1318 = vmul.f32 %v1281, %v1313
        %v1319 = vmul.f32 %v1282, %v1313
        %v1320 = vmul.f32 %v1283, %v1313
        %v1321 = vmul.f32 %v1284, %v1313
        %v1322 = vmul.f32 %v1285, %v1313
        %v1323 = vmul.f32 %v1286, %v1313
        %v1324 = vmul.f32 %v1287, %v1313
        %v1325 = vmul.f32 %v1288, %v1313
        %v1326 = vmul.f32 %v1289, %v1313
        %v1327 = vmul.f32 %v1290, %v1313
        %v1328 = vmul.f32 %v1291, %v1313
        %v1329 = vmul.f32 %v1292, %v1313
        %v1330 = vmul.f32 %v1293, %v1313
        %v1331 = vmul.f32 %v1294, %v1313
        %v1332 = vmul.f32 %v1295, %v1313
        %v1333 = vmul.f32 %v1296, %v1313
        %v1334 = vmul.f32 %v1297, %v1313
        %v1335 = vmul.f32 %v1298, %v1313
        %v1336 = vmul.f32 %v1299, %v1313
        %v1337 = vmul.f32 %v1300, %v1313
        %v1338 = vmul.f32 %v1301, %v1313
        %v1339 = vmul.f32 %v1302, %v1313
        %v1340 = vmul.f32 %v1303, %v1313
        %v1341 = vmul.f32 %v1304, %v1313
        %v1342 = vmul.f32 %v1305, %v1313
        %v1343 = vmul.f32 %v1306, %v1313
        %v1344 = vmul.f32 %v1307, %v1313
        %v1345 = vmul.f32 %v1308, %v1313
        %v1346 = vld [vmem:[%s169 + $0x2] sm:$0x1]
        %v1347 = vlaneseq
        %v1348 = vshrl.u32 %v1347, 7
        %v1349 = vsub.s32 0, %v1348
        %v1350 = vrot.slane %v1346, %v1349
        %v1351 = vadd.f32 %v1314, %v1350
        %v1352 = vadd.f32 %v1315, %v1350
        %v1353 = vadd.f32 %v1316, %v1350
        %v1354 = vadd.f32 %v1317, %v1350
        %v1355 = vadd.f32 %v1318, %v1350
        %v1356 = vadd.f32 %v1319, %v1350
        %v1357 = vadd.f32 %v1320, %v1350
        %v1358 = vadd.f32 %v1321, %v1350
        %v1359 = vadd.f32 %v1322, %v1350
        %v1360 = vadd.f32 %v1323, %v1350
        %v1361 = vadd.f32 %v1324, %v1350
        %v1362 = vadd.f32 %v1325, %v1350
        %v1363 = vadd.f32 %v1326, %v1350
        %v1364 = vadd.f32 %v1327, %v1350
        %v1365 = vadd.f32 %v1328, %v1350
        %v1366 = vadd.f32 %v1329, %v1350
        %v1367 = vadd.f32 %v1330, %v1350
        %v1368 = vadd.f32 %v1331, %v1350
        %v1369 = vadd.f32 %v1332, %v1350
        %v1370 = vadd.f32 %v1333, %v1350
        %v1371 = vadd.f32 %v1334, %v1350
        %v1372 = vadd.f32 %v1335, %v1350
        %v1373 = vadd.f32 %v1336, %v1350
        %v1374 = vadd.f32 %v1337, %v1350
        %v1375 = vadd.f32 %v1338, %v1350
        %v1376 = vadd.f32 %v1339, %v1350
        %v1377 = vadd.f32 %v1340, %v1350
        %v1378 = vadd.f32 %v1341, %v1350
        %v1379 = vadd.f32 %v1342, %v1350
        %v1380 = vadd.f32 %v1343, %v1350
        %v1381 = vadd.f32 %v1344, %v1350
        %v1382 = vadd.f32 %v1345, %v1350
        %p1383 = scmp.lt.s32.totalorder %s22, 1
        %v1384 = vmax.f32 %v1351, 0.0
        %v1385 = vmax.f32 %v1352, 0.0
        %v1386 = vmax.f32 %v1353, 0.0
        %v1387 = vmax.f32 %v1354, 0.0
        %v1388 = vmax.f32 %v1355, 0.0
        %v1389 = vmax.f32 %v1356, 0.0
        %v1390 = vmax.f32 %v1357, 0.0
        %v1391 = vmax.f32 %v1358, 0.0
        %v1392 = vmax.f32 %v1359, 0.0
        %v1393 = vmax.f32 %v1360, 0.0
        %v1394 = vmax.f32 %v1361, 0.0
        %v1395 = vmax.f32 %v1362, 0.0
        %v1396 = vmax.f32 %v1363, 0.0
        %v1397 = vmax.f32 %v1364, 0.0
        %v1398 = vmax.f32 %v1365, 0.0
        %v1399 = vmax.f32 %v1366, 0.0
        %v1400 = vmax.f32 %v1367, 0.0
        %v1401 = vmax.f32 %v1368, 0.0
        %v1402 = vmax.f32 %v1369, 0.0
        %v1403 = vmax.f32 %v1370, 0.0
        %v1404 = vmax.f32 %v1371, 0.0
        %v1405 = vmax.f32 %v1372, 0.0
        %v1406 = vmax.f32 %v1373, 0.0
        %v1407 = vmax.f32 %v1374, 0.0
        %v1408 = vmax.f32 %v1375, 0.0
        %v1409 = vmax.f32 %v1376, 0.0
        %v1410 = vmax.f32 %v1377, 0.0
        %v1411 = vmax.f32 %v1378, 0.0
        %v1412 = vmax.f32 %v1379, 0.0
        %v1413 = vmax.f32 %v1380, 0.0
        %v1414 = vmax.f32 %v1381, 0.0
        %v1415 = vmax.f32 %v1382, 0.0
        %s1416 = scalar_select %p1383, 1, 0
        %v1417 = vstv %s1416
        %vm1418 = vcmp.eq.s32.totalorder %v1417, 1
        %v1419 = vsel %vm1418, %v1384, %v1351
        %v1420 = vsel %vm1418, %v1385, %v1352
        %v1421 = vsel %vm1418, %v1386, %v1353
        %v1422 = vsel %vm1418, %v1387, %v1354
        %v1423 = vsel %vm1418, %v1388, %v1355
        %v1424 = vsel %vm1418, %v1389, %v1356
        %v1425 = vsel %vm1418, %v1390, %v1357
        %v1426 = vsel %vm1418, %v1391, %v1358
        %v1427 = vsel %vm1418, %v1392, %v1359
        %v1428 = vsel %vm1418, %v1393, %v1360
        %v1429 = vsel %vm1418, %v1394, %v1361
        %v1430 = vsel %vm1418, %v1395, %v1362
        %v1431 = vsel %vm1418, %v1396, %v1363
        %v1432 = vsel %vm1418, %v1397, %v1364
        %v1433 = vsel %vm1418, %v1398, %v1365
        %v1434 = vsel %vm1418, %v1399, %v1366
        %v1435 = vsel %vm1418, %v1400, %v1367
        %v1436 = vsel %vm1418, %v1401, %v1368
        %v1437 = vsel %vm1418, %v1402, %v1369
        %v1438 = vsel %vm1418, %v1403, %v1370
        %v1439 = vsel %vm1418, %v1404, %v1371
        %v1440 = vsel %vm1418, %v1405, %v1372
        %v1441 = vsel %vm1418, %v1406, %v1373
        %v1442 = vsel %vm1418, %v1407, %v1374
        %v1443 = vsel %vm1418, %v1408, %v1375
        %v1444 = vsel %vm1418, %v1409, %v1376
        %v1445 = vsel %vm1418, %v1410, %v1377
        %v1446 = vsel %vm1418, %v1411, %v1378
        %v1447 = vsel %vm1418, %v1412, %v1379
        %v1448 = vsel %vm1418, %v1413, %v1380
        %v1449 = vsel %vm1418, %v1414, %v1381
        %v1450 = vsel %vm1418, %v1415, %v1382
        %v1451 = vpack.c.bf16 %v1420, %v1419
        %v1452 = vpack.c.bf16 %v1422, %v1421
        %v1453 = vpack.c.bf16 %v1424, %v1423
        %v1454 = vpack.c.bf16 %v1426, %v1425
        %v1455 = vpack.c.bf16 %v1428, %v1427
        %v1456 = vpack.c.bf16 %v1430, %v1429
        %v1457 = vpack.c.bf16 %v1432, %v1431
        %v1458 = vpack.c.bf16 %v1434, %v1433
        %v1459 = vpack.c.bf16 %v1436, %v1435
        %v1460 = vpack.c.bf16 %v1438, %v1437
        %v1461 = vpack.c.bf16 %v1440, %v1439
        %v1462 = vpack.c.bf16 %v1442, %v1441
        %v1463 = vpack.c.bf16 %v1444, %v1443
        %v1464 = vpack.c.bf16 %v1446, %v1445
        %v1465 = vpack.c.bf16 %v1448, %v1447
        %v1466 = vpack.c.bf16 %v1450, %v1449
        %s1467 = smul.u32 %s177, 16
        %s1468 = smul.addr %s1467, 8
        %s1469 = scalar_lea.vmem [#allocation2], %s1468
        %s1470 = smul.addr %s433, 8
        %s1471 = scalar_lea.vmem %s1469, %s1470 [#allocation2]
        %1472 = vst [vmem:[%s1471] sm:$0xff] %v1451
        %1473 = vst [vmem:[%s1471 + $0x8] sm:$0xff] %v1452
        %1474 = vst [vmem:[%s1471 + $0x10] sm:$0xff] %v1453
        %1475 = vst [vmem:[%s1471 + $0x18] sm:$0xff] %v1454
        %1476 = vst [vmem:[%s1471 + $0x20] sm:$0xff] %v1455
        %1477 = vst [vmem:[%s1471 + $0x28] sm:$0xff] %v1456
        %1478 = vst [vmem:[%s1471 + $0x30] sm:$0xff] %v1457
        %1479 = vst [vmem:[%s1471 + $0x38] sm:$0xff] %v1458
        %1480 = vst [vmem:[%s1471 + $0x40] sm:$0xff] %v1459
        %1481 = vst [vmem:[%s1471 + $0x48] sm:$0xff] %v1460
        %1482 = vst [vmem:[%s1471 + $0x50] sm:$0xff] %v1461
        %1483 = vst [vmem:[%s1471 + $0x58] sm:$0xff] %v1462
        %1484 = vst [vmem:[%s1471 + $0x60] sm:$0xff] %v1463
        %1485 = vst [vmem:[%s1471 + $0x68] sm:$0xff] %v1464
        %1486 = vst [vmem:[%s1471 + $0x70] sm:$0xff] %v1465
        %1487 = vst [vmem:[%s1471 + $0x78] sm:$0xff] %v1466
        %p1488 = scmp.eq.s32.totalorder %s22, 1
        // Predicated region
        $region49: #{tpu_custom_call.1} parent=31 // pred_check
          %p1489 = pneg %p1488
        $region50: #{tpu_custom_call.1} parent=31 // pred_check_branch
          %1491 = sbr.rel (%p1489) target = $region52
        $region51: #{tpu_custom_call.1} parent=31 // pred_region
          %1492 = vst [vmem:[#allocation3] sm:$0xff] %v1419
          %1493 = vst [vmem:[#allocation3 + $0x8] sm:$0xff] %v1420
          %1494 = vst [vmem:[#allocation3 + $0x10] sm:$0xff] %v1421
          %1495 = vst [vmem:[#allocation3 + $0x18] sm:$0xff] %v1422
          %1496 = vst [vmem:[#allocation3 + $0x20] sm:$0xff] %v1423
          %1497 = vst [vmem:[#allocation3 + $0x28] sm:$0xff] %v1424
          %1498 = vst [vmem:[#allocation3 + $0x30] sm:$0xff] %v1425
          %1499 = vst [vmem:[#allocation3 + $0x38] sm:$0xff] %v1426
          %1500 = vst [vmem:[#allocation3 + $0x40] sm:$0xff] %v1427
          %1501 = vst [vmem:[#allocation3 + $0x48] sm:$0xff] %v1428
          %1502 = vst [vmem:[#allocation3 + $0x50] sm:$0xff] %v1429
          %1503 = vst [vmem:[#allocation3 + $0x58] sm:$0xff] %v1430
          %1504 = vst [vmem:[#allocation3 + $0x60] sm:$0xff] %v1431
          %1505 = vst [vmem:[#allocation3 + $0x68] sm:$0xff] %v1432
          %1506 = vst [vmem:[#allocation3 + $0x70] sm:$0xff] %v1433
          %1507 = vst [vmem:[#allocation3 + $0x78] sm:$0xff] %v1434
          %1508 = vst [vmem:[#allocation3 + $0x80] sm:$0xff] %v1435
          %1509 = vst [vmem:[#allocation3 + $0x88] sm:$0xff] %v1436
          %1510 = vst [vmem:[#allocation3 + $0x90] sm:$0xff] %v1437
          %1511 = vst [vmem:[#allocation3 + $0x98] sm:$0xff] %v1438
          %1512 = vst [vmem:[#allocation3 + $0xa0] sm:$0xff] %v1439
          %1513 = vst [vmem:[#allocation3 + $0xa8] sm:$0xff] %v1440
          %1514 = vst [vmem:[#allocation3 + $0xb0] sm:$0xff] %v1441
          %1515 = vst [vmem:[#allocation3 + $0xb8] sm:$0xff] %v1442
          %1516 = vst [vmem:[#allocation3 + $0xc0] sm:$0xff] %v1443
          %1517 = vst [vmem:[#allocation3 + $0xc8] sm:$0xff] %v1444
          %1518 = vst [vmem:[#allocation3 + $0xd0] sm:$0xff] %v1445
          %1519 = vst [vmem:[#allocation3 + $0xd8] sm:$0xff] %v1446
          %1520 = vst [vmem:[#allocation3 + $0xe0] sm:$0xff] %v1447
          %1521 = vst [vmem:[#allocation3 + $0xe8] sm:$0xff] %v1448
          %1522 = vst [vmem:[#allocation3 + $0xf0] sm:$0xff] %v1449
          %1523 = vst [vmem:[#allocation3 + $0xf8] sm:$0xff] %v1450
          %s1524 = smul.addr %s199, 16
          %s1525 = scalar_lea.hbm %s4, %s1524
          // Predicated region
          $region53: #{tpu_custom_call.1} parent=51 // pred_check
            _
          $region54: #{tpu_custom_call.1} parent=51 // pred_check_branch
            %1527 = sbr.rel target = $region56
          $region55: #{tpu_custom_call.1} parent=51 // pred_region
            %1528 = sst [smem:[#allocation11]] [#allocation14]
            %1529 = sst [smem:[#allocation12]] [#allocation13]
          $region56: #{tpu_custom_call.1} parent=51 // pred_fallthru
            _
          %1531 = shalt.err (0)
          %s1533 = sshll.u32 [#allocation3], 4
          %s1534 = int_to_ptr.vmem [resolvable:$true] %s1533
          %1536 = dma.vmem_to_hbm [thread:$0]  %s1534, 4096, %s1525, [#allocation4]
          %s1537 = smul.u32 256, 1
          %s1538 = sshll.u32 %s1537, 4
          %1539 = dma.done [#allocation4], %s1538
        $region52: #{tpu_custom_call.1} parent=31 // pred_fallthru
          _
      $region32: #{tpu_custom_call.1} parent=5 // pred_fallthru
        _
    $region6: #{tpu_custom_call.1} parent=1 // loop_footer
      %s18 = sadd.s32 1, %s14
    $region7: #{tpu_custom_call.1} parent=1 // loop_footer_branch
      %13 = sbr.rel target = $region3
    $region8: #{tpu_custom_call.1} parent=1 // loop_exit
      _
    %1540 = vsyncpa [#allocation6], 1
    %s1541 = scalar_lea.sflag [#allocation6], 1
    %1542 = vsyncpa %s1541, 1
    %1543 = vsyncpa [#allocation8], 1
    %s1544 = scalar_lea.sflag [#allocation8], 1
    %1545 = vsyncpa %s1544, 1
  %1546 = vsyncmov [#allocation4]
  %s1547 = vpop.sfrf %1546
  %p1548 = scmp.eq.s32.totalorder %s1547, 0
  %p1549 = pneg %p1548
  %1551 = shalt.err (%p1549)

</llo_original>
